<compile_context>
chip_gen: v7x
topology: tpu7x:2x2x1
jax: 0.10.0
libtpu: 0.0.40
codegen_flags: <defaults>
</compile_context>

<pallas_src>
import functools

import numpy as np

import jax
import jax.numpy as jnp
from jax.experimental import pallas as pl
from jax.experimental.pallas import tpu as pltpu

EPS = 1e-5


# ---------------------------------------------------------------------------
# constant 0/1 tap-selection tensors (numpy, cached on static shapes)
# ---------------------------------------------------------------------------
@functools.lru_cache(maxsize=None)
def _conv_tap_selector(in_w, stride, out_w):
    """S[kw, wi, j] = 1 iff input column wi feeds output column j at W-tap kw
    for a 3-wide / pad=1 conv (W padding handled by omission)."""
    kw = np.arange(3)[:, None, None]
    wi = np.arange(in_w)[None, :, None]
    j = np.arange(out_w)[None, None, :]
    return (wi == stride * j + kw - 1).astype(np.float32)


@functools.lru_cache(maxsize=None)
def _shortcut_selector(in_w, stride, out_w):
    """S[wi, j] = 1 iff input column wi feeds output column j for the 1x1 conv."""
    wi = np.arange(in_w)[:, None]
    j = np.arange(out_w)[None, :]
    return (wi == stride * j).astype(np.float32)


@functools.lru_cache(maxsize=None)
def _group_sum_mats(out_w, cout):
    """0/1 matrices mapping lane-dense (Wo*C) partial sums <-> per-channel stats."""
    gmat = np.tile(np.eye(cout, dtype=np.float32), (out_w, 1))   # (Wo*C, C)
    return gmat, np.ascontiguousarray(gmat.T)                    # (C, Wo*C)


# ---------------------------------------------------------------------------
# wrapper-side weight expansion (per-H-tap Toeplitz, no halo columns, no scatter loop)
# ---------------------------------------------------------------------------
def _conv3x3_tap_weights(w_hwio, in_w, stride, out_w, dtype):
    """HWIO (3,3,Cin,Cout) -> per-H-tap matmul weights (3, in_w*Cin, out_w*Cout)."""
    _, _, cin, cout = w_hwio.shape
    sel = jnp.asarray(_conv_tap_selector(in_w, stride, out_w), w_hwio.dtype)
    wt = jnp.einsum("kaj,dkio->daijo", sel, w_hwio)      # (3, W, Cin, Wo, Cout)
    return wt.reshape(3, in_w * cin, out_w * cout).astype(dtype)


def _shortcut_tap_weight(w_io, in_w, stride, out_w, dtype):
    """IO (Cin,Cout) 1x1/stride weight on the center-H-tap LHS layout."""
    cin, cout = w_io.shape
    sel = jnp.asarray(_shortcut_selector(in_w, stride, out_w), w_io.dtype)
    wt = jnp.einsum("aj,io->aijo", sel, w_io)            # (W, Cin, Wo, Cout)
    return wt.reshape(in_w * cin, out_w * cout).astype(dtype)


# ---------------------------------------------------------------------------
# in-kernel helper: batched training-mode BatchNorm on lane-dense activations
# ---------------------------------------------------------------------------
def _bn_multi(ys, gammas, betas, gmat, gtmat, inv_count):
    """Normalize each y in `ys` (rows, Wo*C) with its own batch statistics.

    All per-(w,c) lane partial sums are reduced to per-channel stats with ONE
    group-sum matmul, and all affine scale/shift rows are broadcast back with
    ONE matmul (2 tiny matmuls total, regardless of len(ys))."""
    k = len(ys)
    sum_rows = []
    for y in ys:
        sum_rows.append(jnp.sum(y, axis=0, keepdims=True))        # (1, Wo*C)
        sum_rows.append(jnp.sum(y * y, axis=0, keepdims=True))    # (1, Wo*C)
    sums = jnp.concatenate(sum_rows, axis=0)                      # (2k, Wo*C)
    sums_c = jnp.dot(sums, gmat, preferred_element_type=jnp.float32)   # (2k, C)

    ss_rows = []
    for i in range(k):
        mean = sums_c[2 * i:2 * i + 1] * inv_count
        var = sums_c[2 * i + 1:2 * i + 2] * inv_count - mean * mean    # biased
        inv = jax.lax.rsqrt(var + EPS)
        scale = gammas[i] * inv                                    # (1, C)
        ss_rows.append(scale)
        ss_rows.append(betas[i] - mean * scale)
    ss = jnp.concatenate(ss_rows, axis=0)                          # (2k, C)
    ss_d = jnp.dot(ss, gtmat, preferred_element_type=jnp.float32)  # (2k, Wo*C)

    return [ys[i] * ss_d[2 * i:2 * i + 1] + ss_d[2 * i + 1:2 * i + 2]
            for i in range(k)]


# ---------------------------------------------------------------------------
# kernel: whole residual block, VMEM-resident, lane-dense throughout
# ---------------------------------------------------------------------------
def _residual_block_kernel(stride, n, h, w, cin, cout, has_proj, mm_dtype,
                           x_ref, w1_02_ref, w1_1_ref, w2_ref,
                           g1_ref, b1_ref, g2_ref, b2_ref, gsc_ref, bsc_ref,
                           gmat_ref, gtmat_ref,
                           out_ref, xpad_ref, y1pad_ref, *opt_sc):
    ho, wo = h // stride, w // stride
    rows = n * ho
    k1 = w * cin
    m = wo * cout
    inv_count = 1.0 / float(n * ho * wo)

    gmat = gmat_ref[...]
    gtmat = gtmat_ref[...]

    # ---- stage x ONCE into an H-zero-padded, matmul-dtype buffer ---------------
    zrow = jnp.zeros((n, 1, k1), mm_dtype)
    xpad_ref[:, 0:1, :] = zrow
    xpad_ref[:, h + 1:h + 2, :] = zrow
    xpad_ref[:, 1:h + 1, :] = x_ref[...].astype(mm_dtype)

    def conv1_tap(di):
        if stride == 1:
            t = xpad_ref[:, di:di + ho, :]
        else:
            # single strided sublane read instead of Ho per-row copies
            t = xpad_ref[:, pl.ds(di, ho, stride=stride), :]
        return t.reshape(rows, k1)

    # ---- conv1 (+ fused 1x1 projection on the center tap): 3 accumulated matmuls
    yc = jnp.dot(conv1_tap(1), w1_1_ref[...], preferred_element_type=jnp.float32)
    y1_raw = yc[:, :m] if has_proj else yc
    y1_raw = y1_raw + jnp.dot(conv1_tap(0), w1_02_ref[0],
                              preferred_element_type=jnp.float32)
    y1_raw = y1_raw + jnp.dot(conv1_tap(2), w1_02_ref[1],
                              preferred_element_type=jnp.float32)

    # ---- BN1 (+ BN-shortcut, batched into the same tiny matmuls) + ReLU --------
    if has_proj:
        y1n, scn = _bn_multi([y1_raw, yc[:, m:]],
                             [g1_ref[...], gsc_ref[...]],
                             [b1_ref[...], bsc_ref[...]],
                             gmat, gtmat, inv_count)
        opt_sc[0][...] = scn          # stash; frees vregs across the conv2 matmuls
    else:
        (y1n,) = _bn_multi([y1_raw], [g1_ref[...]], [b1_ref[...]],
                           gmat, gtmat, inv_count)
    y1 = jnp.maximum(y1n, 0.0)

    # ---- stage y1 ONCE into an H-zero-padded buffer; conv2 = 3 accumulated matmuls
    zrow2 = jnp.zeros((n, 1, m), mm_dtype)
    y1pad_ref[:, 0:1, :] = zrow2
    y1pad_ref[:, ho + 1:ho + 2, :] = zrow2
    y1pad_ref[:, 1:ho + 1, :] = y1.reshape(n, ho, m).astype(mm_dtype)

    def conv2_tap(di):
        return y1pad_ref[:, di:di + ho, :].reshape(rows, m)

    y2_raw = jnp.dot(conv2_tap(0), w2_ref[0], preferred_element_type=jnp.float32)
    y2_raw = y2_raw + jnp.dot(conv2_tap(1), w2_ref[1],
                              preferred_element_type=jnp.float32)
    y2_raw = y2_raw + jnp.dot(conv2_tap(2), w2_ref[2],
                              preferred_element_type=jnp.float32)

    (y2,) = _bn_multi([y2_raw], [g2_ref[...]], [b2_ref[...]],
                      gmat, gtmat, inv_count)

    # ---- shortcut (deferred read) + residual add + ReLU, lane-dense store ------
    if has_proj:
        sc = opt_sc[0][...]
    else:
        sc = x_ref[...].reshape(rows, m).astype(jnp.float32)
    out_ref[...] = jnp.maximum(y2 + sc, 0.0).astype(out_ref.dtype)


# ---------------------------------------------------------------------------
# wrappers
# ---------------------------------------------------------------------------
def _vmem_limit_bytes():
    """Generation-aware VMEM limit (~100 MiB on v5e/v6e, < 64 MiB physical on v7x)."""
    try:
        cap = int(pltpu.get_tpu_info().vmem_capacity_bytes)
    except Exception:
        cap = 64 * 1024 * 1024
    return min(cap - 4 * 1024 * 1024, 100 * 1024 * 1024)


def residual_block_nhwc(x_nhwc, params, stride=1, matmul_dtype=jnp.bfloat16):
    n, h, w, cin = x_nhwc.shape
    cout = params["w1"].shape[-1]
    assert h % stride == 0 and w % stride == 0
    ho, wo = h // stride, w // stride
    has_proj = (stride != 1) or (cin != cout)
    out_dt = x_nhwc.dtype
    m = wo * cout

    # lane-dense input presentation: (N, H, W*Cin)  (free: HBM is contiguous)
    x_lane = x_nhwc.reshape(n, h, w * cin)

    # Per-H-tap Toeplitz weights (no halo columns).  NOTE: these depend only on
    # the conv weights + static shapes; in a real model, build them once per
    # weight update rather than per forward call.
    wt1 = _conv3x3_tap_weights(params["w1"], w, stride, wo, matmul_dtype)
    w1_02 = jnp.stack([wt1[0], wt1[2]])                    # (2, W*Cin, M)
    w1_1 = wt1[1]                                          # (W*Cin, M)
    if has_proj:
        # fuse the 1x1 projection only into the center-tap matmul (extra columns)
        w1_1 = jnp.concatenate(
            [w1_1, _shortcut_tap_weight(params["wsc"], w, stride, wo, matmul_dtype)],
            axis=1)                                        # (W*Cin, 2*M)
        gsc, bsc = params["gsc"], params["bsc"]
    else:
        gsc = jnp.ones((1, cout), jnp.float32)             # unused in the kernel
        bsc = jnp.zeros((1, cout), jnp.float32)            # unused in the kernel
    wt2 = _conv3x3_tap_weights(params["w2"], wo, 1, wo, matmul_dtype)   # (3, M, M)

    gmat_np, gtmat_np = _group_sum_mats(wo, cout)
    gmat = jnp.asarray(gmat_np)
    gtmat = jnp.asarray(gtmat_np)

    kernel = functools.partial(_residual_block_kernel,
                               stride, n, h, w, cin, cout, has_proj, matmul_dtype)
    vmem_spec = pl.BlockSpec(memory_space=pltpu.MemorySpace.VMEM)

    scratch_shapes = [
        pltpu.VMEM((n, h + 2, w * cin), matmul_dtype),     # H-padded x (single copy)
        pltpu.VMEM((n, ho + 2, m), matmul_dtype),          # H-padded y1 (single copy)
    ]
    if has_proj:
        scratch_shapes.append(pltpu.VMEM((n * ho, m), jnp.float32))   # stashed shortcut

    out2d = pl.pallas_call(
        kernel,
        out_shape=jax.ShapeDtypeStruct((n * ho, m), out_dt),
        in_specs=[vmem_spec] * 12,
        out_specs=vmem_spec,
        scratch_shapes=scratch_shapes,
        compiler_params=pltpu.CompilerParams(vmem_limit_bytes=_vmem_limit_bytes()),
    )(x_lane, w1_02, w1_1, wt2,
      params["g1"], params["b1"], params["g2"], params["b2"], gsc, bsc,
      gmat, gtmat)

    return out2d.reshape(n, ho, wo, cout)


@functools.partial(jax.jit, static_argnames=("stride", "matmul_dtype"))
def residual_block(x_nchw, params, stride=1, matmul_dtype=jnp.bfloat16):
    """Forward of the PyTorch ResidualBlock on an NCHW input (NCHW output)."""
    x = jnp.transpose(x_nchw, (0, 2, 3, 1))
    y = residual_block_nhwc(x, params, stride=stride, matmul_dtype=matmul_dtype)
    return jnp.transpose(y, (0, 3, 1, 2))


# ---------------------------------------------------------------------------
# pure-JAX reference (numerical check only)
# ---------------------------------------------------------------------------
def _residual_block_ref(x_nchw, p, stride=1):
    x = jnp.transpose(x_nchw, (0, 2, 3, 1))

    def conv(inp, w_hwio, s, pad):
        return jax.lax.conv_general_dilated(
            inp, w_hwio, (s, s), ((pad, pad), (pad, pad)),
            dimension_numbers=("NHWC", "HWIO", "NHWC"))

    def bn(y, g, b):
        mean = jnp.mean(y, axis=(0, 1, 2), keepdims=True)
        var = jnp.mean((y - mean) ** 2, axis=(0, 1, 2), keepdims=True)
        return ((y - mean) * jax.lax.rsqrt(var + EPS)
                * g.reshape(1, 1, 1, -1) + b.reshape(1, 1, 1, -1))

    y = conv(x, p["w1"], stride, 1)
    y = jnp.maximum(bn(y, p["g1"], p["b1"]), 0.0)
    y = conv(y, p["w2"], 1, 1)
    y = bn(y, p["g2"], p["b2"])
    if "wsc" in p:
        sc = bn(conv(x, p["wsc"][None, None], stride, 0), p["gsc"], p["bsc"])
    else:
        sc = x
    return jnp.transpose(jnp.maximum(y + sc, 0.0), (0, 3, 1, 2))


# ---------------------------------------------------------------------------
if __name__ == "__main__":
    # Weights are generated directly in HWIO (3,3,Cin,Cout) / IO (Cin,Cout); a
    # PyTorch OIHW conv weight would be converted via w.transpose(2, 3, 1, 0).
    def make_params(key, cin, cout, has_proj):
        ks = jax.random.split(key, 9)
        p = {
            "w1": 0.1 * jax.random.normal(ks[0], (3, 3, cin, cout), jnp.float32),
            "g1": 1.0 + 0.1 * jax.random.normal(ks[1], (1, cout), jnp.float32),
            "b1": 0.1 * jax.random.normal(ks[2], (1, cout), jnp.float32),
            "w2": 0.1 * jax.random.normal(ks[3], (3, 3, cout, cout), jnp.float32),
            "g2": 1.0 + 0.1 * jax.random.normal(ks[4], (1, cout), jnp.float32),
            "b2": 0.1 * jax.random.normal(ks[5], (1, cout), jnp.float32),
        }
        if has_proj:
            p["wsc"] = 0.1 * jax.random.normal(ks[6], (cin, cout), jnp.float32)
            p["gsc"] = 1.0 + 0.1 * jax.random.normal(ks[7], (1, cout), jnp.float32)
            p["bsc"] = 0.1 * jax.random.normal(ks[8], (1, cout), jnp.float32)
        return p

    key = jax.random.PRNGKey(0)
    cases = [
        # (N, Cin, Cout, H, W, stride)
        (2, 4, 8, 16, 16, 1),   # projection shortcut (Cin != Cout), stride 1
        (2, 4, 8, 16, 16, 2),   # projection shortcut, stride 2
        (2, 8, 8, 16, 16, 1),   # identity shortcut
    ]
    for n, cin, cout, h, w, s in cases:
        key, kp, kx = jax.random.split(key, 3)
        has_proj = (s != 1) or (cin != cout)
        p = make_params(kp, cin, cout, has_proj)
        x = jax.random.normal(kx, (n, cin, h, w), jnp.float32)   # NCHW, like PyTorch
        ref = jax.block_until_ready(_residual_block_ref(x, p, stride=s))

        # strict structural check: f32 matmul path must match the reference tightly
        out32 = jax.block_until_ready(
            residual_block(x, p, stride=s, matmul_dtype=jnp.float32))
        assert out32.shape == (n, cout, h // s, w // s), out32.shape
        err32 = float(jnp.max(jnp.abs(out32 - ref)))
        assert err32 < 1e-3, f"f32 path: stride={s} cin={cin}: max abs err {err32}"

        # fast path (default): bf16 MXU operands, f32 accumulation
        out16 = jax.block_until_ready(residual_block(x, p, stride=s))
        err16 = float(jnp.max(jnp.abs(out16 - ref)))
        assert err16 < 0.25, f"bf16 path: stride={s} cin={cin}: max abs err {err16}"

    print("KERNEL_OK")
</pallas_src>

<mosaic_0001>
module attributes {stable_mosaic.version = 11 : i64} {
  func.func @_residual_block_kernel(%arg0: memref<2x16x64xf32, #tpu.memory_space<vmem>>, %arg1: memref<2x64x128xf32, #tpu.memory_space<vmem>>, %arg2: memref<64x256xf32, #tpu.memory_space<vmem>>, %arg3: memref<3x128x128xf32, #tpu.memory_space<vmem>>, %arg4: memref<1x8xf32, #tpu.memory_space<vmem>>, %arg5: memref<1x8xf32, #tpu.memory_space<vmem>>, %arg6: memref<1x8xf32, #tpu.memory_space<vmem>>, %arg7: memref<1x8xf32, #tpu.memory_space<vmem>>, %arg8: memref<1x8xf32, #tpu.memory_space<vmem>>, %arg9: memref<1x8xf32, #tpu.memory_space<vmem>>, %arg10: memref<128x8xf32, #tpu.memory_space<vmem>>, %arg11: memref<8x128xf32, #tpu.memory_space<vmem>>, %arg12: memref<32x128xf32, #tpu.memory_space<vmem>>, %arg13: memref<2x18x64xf32, #tpu.memory_space<vmem>>, %arg14: memref<2x18x128xf32, #tpu.memory_space<vmem>>, %arg15: memref<32x128xf32, #tpu.memory_space<vmem>>) attributes {dimension_semantics = [], scalar_prefetch = 0 : i64, scratch_operands = 3 : i64, tpu.core_type = #tpu.core_type<tc>} {
    %c0 = arith.constant 0 : index
    %c0_0 = arith.constant 0 : index
    %0 = vector.load %arg10[%c0, %c0_0] : memref<128x8xf32, #tpu.memory_space<vmem>>, vector<128x8xf32>
    %c0_1 = arith.constant 0 : index
    %c0_2 = arith.constant 0 : index
    %1 = vector.load %arg11[%c0_1, %c0_2] : memref<8x128xf32, #tpu.memory_space<vmem>>, vector<8x128xf32>
    %cst = arith.constant 0.000000e+00 : f32
    %2 = vector.broadcast %cst : f32 to vector<2x1x64xf32>
    %c0_3 = arith.constant 0 : index
    %c0_4 = arith.constant 0 : index
    %c0_5 = arith.constant 0 : index
    %3 = vector.load %arg13[%c0_3, %c0_4, %c0_5] : memref<2x18x64xf32, #tpu.memory_space<vmem>>, vector<2x1x64xf32>
    tpu.vector_store %arg13[%c0_3, %c0_4, %c0_5], %2 {strides = array<i32>} : memref<2x18x64xf32, #tpu.memory_space<vmem>>, vector<2x1x64xf32>,
    %c0_6 = arith.constant 0 : index
    %c17 = arith.constant 17 : index
    %c0_7 = arith.constant 0 : index
    %4 = vector.load %arg13[%c0_6, %c17, %c0_7] : memref<2x18x64xf32, #tpu.memory_space<vmem>>, vector<2x1x64xf32>
    tpu.vector_store %arg13[%c0_6, %c17, %c0_7], %2 {strides = array<i32>} : memref<2x18x64xf32, #tpu.memory_space<vmem>>, vector<2x1x64xf32>,
    %c0_8 = arith.constant 0 : index
    %c0_9 = arith.constant 0 : index
    %c0_10 = arith.constant 0 : index
    %5 = vector.load %arg0[%c0_8, %c0_9, %c0_10] : memref<2x16x64xf32, #tpu.memory_space<vmem>>, vector<2x16x64xf32>
    %c0_11 = arith.constant 0 : index
    %c1 = arith.constant 1 : index
    %c0_12 = arith.constant 0 : index
    %6 = vector.load %arg13[%c0_11, %c1, %c0_12] : memref<2x18x64xf32, #tpu.memory_space<vmem>>, vector<2x16x64xf32>
    tpu.vector_store %arg13[%c0_11, %c1, %c0_12], %5 {strides = array<i32>} : memref<2x18x64xf32, #tpu.memory_space<vmem>>, vector<2x16x64xf32>,
    %c0_13 = arith.constant 0 : index
    %c1_14 = arith.constant 1 : index
    %c0_15 = arith.constant 0 : index
    %7 = vector.load %arg13[%c0_13, %c1_14, %c0_15] : memref<2x18x64xf32, #tpu.memory_space<vmem>>, vector<2x16x64xf32>
    %8 = vector.shape_cast %7 : vector<2x16x64xf32> to vector<32x64xf32>
    %c0_16 = arith.constant 0 : index
    %c0_17 = arith.constant 0 : index
    %9 = vector.load %arg2[%c0_16, %c0_17] : memref<64x256xf32, #tpu.memory_space<vmem>>, vector<64x256xf32>
    %cst_18 = arith.constant dense<0.000000e+00> : vector<32x256xf32>
    %10 = tpu.matmul %8, %9, %cst_18 {dimension_numbers = #tpu.dot_dimension_numbers<[1], [0], [0], [1], [0, 0, 1, 1], [], []>} : vector<32x64xf32>, vector<64x256xf32>, vector<32x256xf32> -> vector<32x256xf32>
    %11 = vector.extract_strided_slice %10 {offsets = [0, 0], sizes = [32, 128], strides = [1, 1]} : vector<32x256xf32> to vector<32x128xf32>
    %c0_19 = arith.constant 0 : index
    %c0_20 = arith.constant 0 : index
    %c0_21 = arith.constant 0 : index
    %12 = vector.load %arg13[%c0_19, %c0_20, %c0_21] : memref<2x18x64xf32, #tpu.memory_space<vmem>>, vector<2x16x64xf32>
    %13 = vector.shape_cast %12 : vector<2x16x64xf32> to vector<32x64xf32>
    %c0_22 = arith.constant 0 : index
    %c0_23 = arith.constant 0 : index
    %c0_24 = arith.constant 0 : index
    %14 = vector.load %arg1[%c0_22, %c0_23, %c0_24] : memref<2x64x128xf32, #tpu.memory_space<vmem>>, vector<1x64x128xf32>
    %15 = vector.shape_cast %14 : vector<1x64x128xf32> to vector<64x128xf32>
    %cst_25 = arith.constant dense<0.000000e+00> : vector<32x128xf32>
    %16 = tpu.matmul %13, %15, %cst_25 {dimension_numbers = #tpu.dot_dimension_numbers<[1], [0], [0], [1], [0, 0, 1, 1], [], []>} : vector<32x64xf32>, vector<64x128xf32>, vector<32x128xf32> -> vector<32x128xf32>
    %17 = arith.addf %11, %16 : vector<32x128xf32>
    %c0_26 = arith.constant 0 : index
    %c2 = arith.constant 2 : index
    %c0_27 = arith.constant 0 : index
    %18 = vector.load %arg13[%c0_26, %c2, %c0_27] : memref<2x18x64xf32, #tpu.memory_space<vmem>>, vector<2x16x64xf32>
    %19 = vector.shape_cast %18 : vector<2x16x64xf32> to vector<32x64xf32>
    %c1_28 = arith.constant 1 : index
    %c0_29 = arith.constant 0 : index
    %c0_30 = arith.constant 0 : index
    %20 = vector.load %arg1[%c1_28, %c0_29, %c0_30] : memref<2x64x128xf32, #tpu.memory_space<vmem>>, vector<1x64x128xf32>
    %21 = vector.shape_cast %20 : vector<1x64x128xf32> to vector<64x128xf32>
    %cst_31 = arith.constant dense<0.000000e+00> : vector<32x128xf32>
    %22 = tpu.matmul %19, %21, %cst_31 {dimension_numbers = #tpu.dot_dimension_numbers<[1], [0], [0], [1], [0, 0, 1, 1], [], []>} : vector<32x64xf32>, vector<64x128xf32>, vector<32x128xf32> -> vector<32x128xf32>
    %23 = arith.addf %17, %22 : vector<32x128xf32>
    %24 = vector.extract_strided_slice %10 {offsets = [0, 128], sizes = [32, 128], strides = [1, 1]} : vector<32x256xf32> to vector<32x128xf32>
    %c0_32 = arith.constant 0 : index
    %c0_33 = arith.constant 0 : index
    %25 = vector.load %arg4[%c0_32, %c0_33] : memref<1x8xf32, #tpu.memory_space<vmem>>, vector<1x8xf32>
    %c0_34 = arith.constant 0 : index
    %c0_35 = arith.constant 0 : index
    %26 = vector.load %arg8[%c0_34, %c0_35] : memref<1x8xf32, #tpu.memory_space<vmem>>, vector<1x8xf32>
    %c0_36 = arith.constant 0 : index
    %c0_37 = arith.constant 0 : index
    %27 = vector.load %arg5[%c0_36, %c0_37] : memref<1x8xf32, #tpu.memory_space<vmem>>, vector<1x8xf32>
    %c0_38 = arith.constant 0 : index
    %c0_39 = arith.constant 0 : index
    %28 = vector.load %arg9[%c0_38, %c0_39] : memref<1x8xf32, #tpu.memory_space<vmem>>, vector<1x8xf32>
    %cst_40 = arith.constant dense<0.000000e+00> : vector<128xf32>
    %29 = vector.multi_reduction <add>, %23, %cst_40 [0] : vector<32x128xf32> to vector<128xf32>
    %30 = vector.shape_cast %29 : vector<128xf32> to vector<1x128xf32>
    %31 = arith.mulf %23, %23 : vector<32x128xf32>
    %cst_41 = arith.constant dense<0.000000e+00> : vector<128xf32>
    %32 = vector.multi_reduction <add>, %31, %cst_41 [0] : vector<32x128xf32> to vector<128xf32>
    %33 = vector.shape_cast %32 : vector<128xf32> to vector<1x128xf32>
    %cst_42 = arith.constant dense<0.000000e+00> : vector<128xf32>
    %34 = vector.multi_reduction <add>, %24, %cst_42 [0] : vector<32x128xf32> to vector<128xf32>
    %35 = vector.shape_cast %34 : vector<128xf32> to vector<1x128xf32>
    %36 = arith.mulf %24, %24 : vector<32x128xf32>
    %cst_43 = arith.constant dense<0.000000e+00> : vector<128xf32>
    %37 = vector.multi_reduction <add>, %36, %cst_43 [0] : vector<32x128xf32> to vector<128xf32>
    %38 = vector.shape_cast %37 : vector<128xf32> to vector<1x128xf32>
    %39 = tpu.concatenate %30, %33, %35, %38 in 0 : vector<1x128xf32>, vector<1x128xf32>, vector<1x128xf32>, vector<1x128xf32> -> vector<4x128xf32>
    %cst_44 = arith.constant dense<0.000000e+00> : vector<4x8xf32>
    %40 = tpu.matmul %39, %0, %cst_44 {dimension_numbers = #tpu.dot_dimension_numbers<[1], [0], [0], [1], [0, 0, 1, 1], [], []>} : vector<4x128xf32>, vector<128x8xf32>, vector<4x8xf32> -> vector<4x8xf32>
    %41 = vector.extract_strided_slice %40 {offsets = [0, 0], sizes = [1, 8], strides = [1, 1]} : vector<4x8xf32> to vector<1x8xf32>
    %cst_45 = arith.constant 0.001953125 : f32
    %42 = vector.broadcast %cst_45 : f32 to vector<1x8xf32>
    %43 = arith.mulf %41, %42 : vector<1x8xf32>
    %44 = vector.extract_strided_slice %40 {offsets = [1, 0], sizes = [1, 8], strides = [1, 1]} : vector<4x8xf32> to vector<1x8xf32>
    %cst_46 = arith.constant 0.001953125 : f32
    %45 = vector.broadcast %cst_46 : f32 to vector<1x8xf32>
    %46 = arith.mulf %44, %45 : vector<1x8xf32>
    %47 = arith.mulf %43, %43 : vector<1x8xf32>
    %48 = arith.subf %46, %47 : vector<1x8xf32>
    %cst_47 = arith.constant 9.99999974E-6 : f32
    %49 = vector.broadcast %cst_47 : f32 to vector<1x8xf32>
    %50 = arith.addf %48, %49 : vector<1x8xf32>
    %51 = math.rsqrt %50 : vector<1x8xf32>
    %52 = arith.mulf %25, %51 : vector<1x8xf32>
    %53 = arith.mulf %43, %52 : vector<1x8xf32>
    %54 = arith.subf %27, %53 : vector<1x8xf32>
    %55 = vector.extract_strided_slice %40 {offsets = [2, 0], sizes = [1, 8], strides = [1, 1]} : vector<4x8xf32> to vector<1x8xf32>
    %cst_48 = arith.constant 0.001953125 : f32
    %56 = vector.broadcast %cst_48 : f32 to vector<1x8xf32>
    %57 = arith.mulf %55, %56 : vector<1x8xf32>
    %58 = vector.extract_strided_slice %40 {offsets = [3, 0], sizes = [1, 8], strides = [1, 1]} : vector<4x8xf32> to vector<1x8xf32>
    %cst_49 = arith.constant 0.001953125 : f32
    %59 = vector.broadcast %cst_49 : f32 to vector<1x8xf32>
    %60 = arith.mulf %58, %59 : vector<1x8xf32>
    %61 = arith.mulf %57, %57 : vector<1x8xf32>
    %62 = arith.subf %60, %61 : vector<1x8xf32>
    %cst_50 = arith.constant 9.99999974E-6 : f32
    %63 = vector.broadcast %cst_50 : f32 to vector<1x8xf32>
    %64 = arith.addf %62, %63 : vector<1x8xf32>
    %65 = math.rsqrt %64 : vector<1x8xf32>
    %66 = arith.mulf %26, %65 : vector<1x8xf32>
    %67 = arith.mulf %57, %66 : vector<1x8xf32>
    %68 = arith.subf %28, %67 : vector<1x8xf32>
    %69 = tpu.concatenate %52, %54, %66, %68 in 0 : vector<1x8xf32>, vector<1x8xf32>, vector<1x8xf32>, vector<1x8xf32> -> vector<4x8xf32>
    %cst_51 = arith.constant dense<0.000000e+00> : vector<4x128xf32>
    %70 = tpu.matmul %69, %1, %cst_51 {dimension_numbers = #tpu.dot_dimension_numbers<[1], [0], [0], [1], [0, 0, 1, 1], [], []>} : vector<4x8xf32>, vector<8x128xf32>, vector<4x128xf32> -> vector<4x128xf32>
    %71 = vector.extract_strided_slice %70 {offsets = [0, 0], sizes = [1, 128], strides = [1, 1]} : vector<4x128xf32> to vector<1x128xf32>
    %72 = vector.broadcast %71 : vector<1x128xf32> to vector<32x128xf32>
    %73 = arith.mulf %23, %72 : vector<32x128xf32>
    %74 = vector.extract_strided_slice %70 {offsets = [1, 0], sizes = [1, 128], strides = [1, 1]} : vector<4x128xf32> to vector<1x128xf32>
    %75 = vector.broadcast %74 : vector<1x128xf32> to vector<32x128xf32>
    %76 = arith.addf %73, %75 : vector<32x128xf32>
    %77 = vector.extract_strided_slice %70 {offsets = [2, 0], sizes = [1, 128], strides = [1, 1]} : vector<4x128xf32> to vector<1x128xf32>
    %78 = vector.broadcast %77 : vector<1x128xf32> to vector<32x128xf32>
    %79 = arith.mulf %24, %78 : vector<32x128xf32>
    %80 = vector.extract_strided_slice %70 {offsets = [3, 0], sizes = [1, 128], strides = [1, 1]} : vector<4x128xf32> to vector<1x128xf32>
    %81 = vector.broadcast %80 : vector<1x128xf32> to vector<32x128xf32>
    %82 = arith.addf %79, %81 : vector<32x128xf32>
    %c0_52 = arith.constant 0 : index
    %c0_53 = arith.constant 0 : index
    %83 = vector.load %arg15[%c0_52, %c0_53] : memref<32x128xf32, #tpu.memory_space<vmem>>, vector<32x128xf32>
    tpu.vector_store %arg15[%c0_52, %c0_53], %82 {strides = array<i32>} : memref<32x128xf32, #tpu.memory_space<vmem>>, vector<32x128xf32>,
    %cst_54 = arith.constant 0.000000e+00 : f32
    %84 = vector.broadcast %cst_54 : f32 to vector<32x128xf32>
    %85 = arith.maximumf %76, %84 : vector<32x128xf32>
    %cst_55 = arith.constant 0.000000e+00 : f32
    %86 = vector.broadcast %cst_55 : f32 to vector<2x1x128xf32>
    %c0_56 = arith.constant 0 : index
    %c0_57 = arith.constant 0 : index
    %c0_58 = arith.constant 0 : index
    %87 = vector.load %arg14[%c0_56, %c0_57, %c0_58] : memref<2x18x128xf32, #tpu.memory_space<vmem>>, vector<2x1x128xf32>
    tpu.vector_store %arg14[%c0_56, %c0_57, %c0_58], %86 {strides = array<i32>} : memref<2x18x128xf32, #tpu.memory_space<vmem>>, vector<2x1x128xf32>,
    %c0_59 = arith.constant 0 : index
    %c17_60 = arith.constant 17 : index
    %c0_61 = arith.constant 0 : index
    %88 = vector.load %arg14[%c0_59, %c17_60, %c0_61] : memref<2x18x128xf32, #tpu.memory_space<vmem>>, vector<2x1x128xf32>
    tpu.vector_store %arg14[%c0_59, %c17_60, %c0_61], %86 {strides = array<i32>} : memref<2x18x128xf32, #tpu.memory_space<vmem>>, vector<2x1x128xf32>,
    %89 = vector.shape_cast %85 : vector<32x128xf32> to vector<2x16x128xf32>
    %c0_62 = arith.constant 0 : index
    %c1_63 = arith.constant 1 : index
    %c0_64 = arith.constant 0 : index
    %90 = vector.load %arg14[%c0_62, %c1_63, %c0_64] : memref<2x18x128xf32, #tpu.memory_space<vmem>>, vector<2x16x128xf32>
    tpu.vector_store %arg14[%c0_62, %c1_63, %c0_64], %89 {strides = array<i32>} : memref<2x18x128xf32, #tpu.memory_space<vmem>>, vector<2x16x128xf32>,
    %c0_65 = arith.constant 0 : index
    %c0_66 = arith.constant 0 : index
    %c0_67 = arith.constant 0 : index
    %91 = vector.load %arg14[%c0_65, %c0_66, %c0_67] : memref<2x18x128xf32, #tpu.memory_space<vmem>>, vector<2x16x128xf32>
    %92 = vector.shape_cast %91 : vector<2x16x128xf32> to vector<32x128xf32>
    %c0_68 = arith.constant 0 : index
    %c0_69 = arith.constant 0 : index
    %c0_70 = arith.constant 0 : index
    %93 = vector.load %arg3[%c0_68, %c0_69, %c0_70] : memref<3x128x128xf32, #tpu.memory_space<vmem>>, vector<1x128x128xf32>
    %94 = vector.shape_cast %93 : vector<1x128x128xf32> to vector<128x128xf32>
    %cst_71 = arith.constant dense<0.000000e+00> : vector<32x128xf32>
    %95 = tpu.matmul %92, %94, %cst_71 {dimension_numbers = #tpu.dot_dimension_numbers<[1], [0], [0], [1], [0, 0, 1, 1], [], []>} : vector<32x128xf32>, vector<128x128xf32>, vector<32x128xf32> -> vector<32x128xf32>
    %c0_72 = arith.constant 0 : index
    %c1_73 = arith.constant 1 : index
    %c0_74 = arith.constant 0 : index
    %96 = vector.load %arg14[%c0_72, %c1_73, %c0_74] : memref<2x18x128xf32, #tpu.memory_space<vmem>>, vector<2x16x128xf32>
    %97 = vector.shape_cast %96 : vector<2x16x128xf32> to vector<32x128xf32>
    %c1_75 = arith.constant 1 : index
    %c0_76 = arith.constant 0 : index
    %c0_77 = arith.constant 0 : index
    %98 = vector.load %arg3[%c1_75, %c0_76, %c0_77] : memref<3x128x128xf32, #tpu.memory_space<vmem>>, vector<1x128x128xf32>
    %99 = vector.shape_cast %98 : vector<1x128x128xf32> to vector<128x128xf32>
    %cst_78 = arith.constant dense<0.000000e+00> : vector<32x128xf32>
    %100 = tpu.matmul %97, %99, %cst_78 {dimension_numbers = #tpu.dot_dimension_numbers<[1], [0], [0], [1], [0, 0, 1, 1], [], []>} : vector<32x128xf32>, vector<128x128xf32>, vector<32x128xf32> -> vector<32x128xf32>
    %101 = arith.addf %95, %100 : vector<32x128xf32>
    %c0_79 = arith.constant 0 : index
    %c2_80 = arith.constant 2 : index
    %c0_81 = arith.constant 0 : index
    %102 = vector.load %arg14[%c0_79, %c2_80, %c0_81] : memref<2x18x128xf32, #tpu.memory_space<vmem>>, vector<2x16x128xf32>
    %103 = vector.shape_cast %102 : vector<2x16x128xf32> to vector<32x128xf32>
    %c2_82 = arith.constant 2 : index
    %c0_83 = arith.constant 0 : index
    %c0_84 = arith.constant 0 : index
    %104 = vector.load %arg3[%c2_82, %c0_83, %c0_84] : memref<3x128x128xf32, #tpu.memory_space<vmem>>, vector<1x128x128xf32>
    %105 = vector.shape_cast %104 : vector<1x128x128xf32> to vector<128x128xf32>
    %cst_85 = arith.constant dense<0.000000e+00> : vector<32x128xf32>
    %106 = tpu.matmul %103, %105, %cst_85 {dimension_numbers = #tpu.dot_dimension_numbers<[1], [0], [0], [1], [0, 0, 1, 1], [], []>} : vector<32x128xf32>, vector<128x128xf32>, vector<32x128xf32> -> vector<32x128xf32>
    %107 = arith.addf %101, %106 : vector<32x128xf32>
    %c0_86 = arith.constant 0 : index
    %c0_87 = arith.constant 0 : index
    %108 = vector.load %arg6[%c0_86, %c0_87] : memref<1x8xf32, #tpu.memory_space<vmem>>, vector<1x8xf32>
    %c0_88 = arith.constant 0 : index
    %c0_89 = arith.constant 0 : index
    %109 = vector.load %arg7[%c0_88, %c0_89] : memref<1x8xf32, #tpu.memory_space<vmem>>, vector<1x8xf32>
    %cst_90 = arith.constant dense<0.000000e+00> : vector<128xf32>
    %110 = vector.multi_reduction <add>, %107, %cst_90 [0] : vector<32x128xf32> to vector<128xf32>
    %111 = vector.shape_cast %110 : vector<128xf32> to vector<1x128xf32>
    %112 = arith.mulf %107, %107 : vector<32x128xf32>
    %cst_91 = arith.constant dense<0.000000e+00> : vector<128xf32>
    %113 = vector.multi_reduction <add>, %112, %cst_91 [0] : vector<32x128xf32> to vector<128xf32>
    %114 = vector.shape_cast %113 : vector<128xf32> to vector<1x128xf32>
    %115 = tpu.concatenate %111, %114 in 0 : vector<1x128xf32>, vector<1x128xf32> -> vector<2x128xf32>
    %cst_92 = arith.constant dense<0.000000e+00> : vector<2x8xf32>
    %116 = tpu.matmul %115, %0, %cst_92 {dimension_numbers = #tpu.dot_dimension_numbers<[1], [0], [0], [1], [0, 0, 1, 1], [], []>} : vector<2x128xf32>, vector<128x8xf32>, vector<2x8xf32> -> vector<2x8xf32>
    %117 = vector.extract_strided_slice %116 {offsets = [0, 0], sizes = [1, 8], strides = [1, 1]} : vector<2x8xf32> to vector<1x8xf32>
    %cst_93 = arith.constant 0.001953125 : f32
    %118 = vector.broadcast %cst_93 : f32 to vector<1x8xf32>
    %119 = arith.mulf %117, %118 : vector<1x8xf32>
    %120 = vector.extract_strided_slice %116 {offsets = [1, 0], sizes = [1, 8], strides = [1, 1]} : vector<2x8xf32> to vector<1x8xf32>
    %cst_94 = arith.constant 0.001953125 : f32
    %121 = vector.broadcast %cst_94 : f32 to vector<1x8xf32>
    %122 = arith.mulf %120, %121 : vector<1x8xf32>
    %123 = arith.mulf %119, %119 : vector<1x8xf32>
    %124 = arith.subf %122, %123 : vector<1x8xf32>
    %cst_95 = arith.constant 9.99999974E-6 : f32
    %125 = vector.broadcast %cst_95 : f32 to vector<1x8xf32>
    %126 = arith.addf %124, %125 : vector<1x8xf32>
    %127 = math.rsqrt %126 : vector<1x8xf32>
    %128 = arith.mulf %108, %127 : vector<1x8xf32>
    %129 = arith.mulf %119, %128 : vector<1x8xf32>
    %130 = arith.subf %109, %129 : vector<1x8xf32>
    %131 = tpu.concatenate %128, %130 in 0 : vector<1x8xf32>, vector<1x8xf32> -> vector<2x8xf32>
    %cst_96 = arith.constant dense<0.000000e+00> : vector<2x128xf32>
    %132 = tpu.matmul %131, %1, %cst_96 {dimension_numbers = #tpu.dot_dimension_numbers<[1], [0], [0], [1], [0, 0, 1, 1], [], []>} : vector<2x8xf32>, vector<8x128xf32>, vector<2x128xf32> -> vector<2x128xf32>
    %133 = vector.extract_strided_slice %132 {offsets = [0, 0], sizes = [1, 128], strides = [1, 1]} : vector<2x128xf32> to vector<1x128xf32>
    %134 = vector.broadcast %133 : vector<1x128xf32> to vector<32x128xf32>
    %135 = arith.mulf %107, %134 : vector<32x128xf32>
    %136 = vector.extract_strided_slice %132 {offsets = [1, 0], sizes = [1, 128], strides = [1, 1]} : vector<2x128xf32> to vector<1x128xf32>
    %137 = vector.broadcast %136 : vector<1x128xf32> to vector<32x128xf32>
    %138 = arith.addf %135, %137 : vector<32x128xf32>
    %c0_97 = arith.constant 0 : index
    %c0_98 = arith.constant 0 : index
    %139 = vector.load %arg15[%c0_97, %c0_98] : memref<32x128xf32, #tpu.memory_space<vmem>>, vector<32x128xf32>
    %140 = arith.addf %138, %139 : vector<32x128xf32>
    %cst_99 = arith.constant 0.000000e+00 : f32
    %141 = vector.broadcast %cst_99 : f32 to vector<32x128xf32>
    %142 = arith.maximumf %140, %141 : vector<32x128xf32>
    %c0_100 = arith.constant 0 : index
    %c0_101 = arith.constant 0 : index
    %143 = vector.load %arg12[%c0_100, %c0_101] : memref<32x128xf32, #tpu.memory_space<vmem>>, vector<32x128xf32>
    tpu.vector_store %arg12[%c0_100, %c0_101], %142 {strides = array<i32>} : memref<32x128xf32, #tpu.memory_space<vmem>>, vector<32x128xf32>,
    return
  }
}

</mosaic_0001>

<llo_original>
// kernel: residual_block.1
$region0: #{residual_block.1}
  #allocation0 [shape = 'u32[]', space=smem, size = 0x4, offset = 0x4, fixed_abs, tag = 'smem constant byte address 0x4 - core index']
  #allocation1 [shape = 'u32[144,128]{1,0:T(1,128)}', space=vmem, size = 0x12000, scoped, tag = 'internal scratch']
  #allocation2 [shape = 'f32[2,18,64]{2,1,0:T(8,128)}', space=vmem, size = 0x6000, scoped, tag = 'scratch operand']
  #allocation3 [shape = 'f32[2,18,128]{2,1,0:T(8,128)}', space=vmem, size = 0x6000, scoped, tag = 'scratch operand']
  #allocation4 [shape = 'f32[32,128]{1,0:T(8,128)}', space=vmem, size = 0x4000, scoped, tag = 'scratch operand']
  %s0 = inlined_call_operand.vmem [shape: f32[2,16,64], index: 0, kind: input, shape index: {}]
  %s1 = inlined_call_operand.vmem [shape: f32[2,64,128], index: 1, kind: input, shape index: {}]
  %s2 = inlined_call_operand.vmem [shape: f32[64,256], index: 2, kind: input, shape index: {}]
  %s3 = inlined_call_operand.vmem [shape: f32[3,128,128], index: 3, kind: input, shape index: {}]
  %s4 = inlined_call_operand.vmem [shape: f32[1,8], index: 4, kind: input, shape index: {}]
  %s5 = inlined_call_operand.vmem [shape: f32[1,8], index: 5, kind: input, shape index: {}]
  %s6 = inlined_call_operand.vmem [shape: f32[1,8], index: 6, kind: input, shape index: {}]
  %s7 = inlined_call_operand.vmem [shape: f32[1,8], index: 7, kind: input, shape index: {}]
  %s8 = inlined_call_operand.vmem [shape: f32[1,8], index: 8, kind: input, shape index: {}]
  %s9 = inlined_call_operand.vmem [shape: f32[1,8], index: 9, kind: input, shape index: {}]
  %s10 = inlined_call_operand.vmem [shape: f32[128,8], index: 10, kind: input, shape index: {}]
  %s11 = inlined_call_operand.vmem [shape: f32[8,128], index: 11, kind: input, shape index: {}]
  %s12 = inlined_call_operand.vmem [shape: f32[32,128], index: 12, kind: output, shape index: {}]
  %s13 = sld [smem:[#allocation0]]
  $region58: #{residual_block.1} parent=0
    _
  %s15 = ssub.s32 1, %s13
  %s16 = scalar_select 0, %s15, %s13
  // Predicated region
  $region2: #{residual_block.1} parent=0 // pred_check
    _
  $region3: #{residual_block.1} parent=0 // pred_check_branch
    %18 = sbr.rel (0) target = $region5
  $region4: #{residual_block.1} parent=0 // pred_region
    _
  $region5: #{residual_block.1} parent=0 // pred_fallthru
    _
  // Predicated region
  $region6: #{residual_block.1} parent=0 // pred_check
    _
  $region7: #{residual_block.1} parent=0 // pred_check_branch
    %20 = sbr.rel (0) target = $region9
  $region8: #{residual_block.1} parent=0 // pred_region
    _
  $region9: #{residual_block.1} parent=0 // pred_fallthru
    _
  // Predicated region
  $region10: #{residual_block.1} parent=0 // pred_check
    _
  $region11: #{residual_block.1} parent=0 // pred_check_branch
    %22 = sbr.rel (0) target = $region13
  $region12: #{residual_block.1} parent=0 // pred_region
    _
  $region13: #{residual_block.1} parent=0 // pred_fallthru
    _
  // Predicated region
  $region14: #{residual_block.1} parent=0 // pred_check
    _
  $region15: #{residual_block.1} parent=0 // pred_check_branch
    %24 = sbr.rel (0) target = $region17
  $region16: #{residual_block.1} parent=0 // pred_region
    _
  $region17: #{residual_block.1} parent=0 // pred_fallthru
    _
  // Predicated region
  $region18: #{residual_block.1} parent=0 // pred_check
    _
  $region19: #{residual_block.1} parent=0 // pred_check_branch
    %26 = sbr.rel (0) target = $region21
  $region20: #{residual_block.1} parent=0 // pred_region
    _
  $region21: #{residual_block.1} parent=0 // pred_fallthru
    _
  // Predicated region
  $region22: #{residual_block.1} parent=0 // pred_check
    _
  $region23: #{residual_block.1} parent=0 // pred_check_branch
    %28 = sbr.rel (0) target = $region25
  $region24: #{residual_block.1} parent=0 // pred_region
    _
  $region25: #{residual_block.1} parent=0 // pred_fallthru
    _
  // Predicated region
  $region26: #{residual_block.1} parent=0 // pred_check
    _
  $region27: #{residual_block.1} parent=0 // pred_check_branch
    %30 = sbr.rel (0) target = $region29
  $region28: #{residual_block.1} parent=0 // pred_region
    _
  $region29: #{residual_block.1} parent=0 // pred_fallthru
    _
  // Predicated region
  $region30: #{residual_block.1} parent=0 // pred_check
    _
  $region31: #{residual_block.1} parent=0 // pred_check_branch
    %32 = sbr.rel (0) target = $region33
  $region32: #{residual_block.1} parent=0 // pred_region
    _
  $region33: #{residual_block.1} parent=0 // pred_fallthru
    _
  // Predicated region
  $region34: #{residual_block.1} parent=0 // pred_check
    _
  $region35: #{residual_block.1} parent=0 // pred_check_branch
    %34 = sbr.rel (0) target = $region37
  $region36: #{residual_block.1} parent=0 // pred_region
    _
  $region37: #{residual_block.1} parent=0 // pred_fallthru
    _
  // Predicated region
  $region38: #{residual_block.1} parent=0 // pred_check
    _
  $region39: #{residual_block.1} parent=0 // pred_check_branch
    %36 = sbr.rel (0) target = $region41
  $region40: #{residual_block.1} parent=0 // pred_region
    _
  $region41: #{residual_block.1} parent=0 // pred_fallthru
    _
  // Predicated region
  $region42: #{residual_block.1} parent=0 // pred_check
    _
  $region43: #{residual_block.1} parent=0 // pred_check_branch
    %38 = sbr.rel (0) target = $region45
  $region44: #{residual_block.1} parent=0 // pred_region
    _
  $region45: #{residual_block.1} parent=0 // pred_fallthru
    _
  // Predicated region
  $region46: #{residual_block.1} parent=0 // pred_check
    _
  $region47: #{residual_block.1} parent=0 // pred_check_branch
    %40 = sbr.rel (0) target = $region49
  $region48: #{residual_block.1} parent=0 // pred_region
    _
  $region49: #{residual_block.1} parent=0 // pred_fallthru
    _
  %v41 = vld [vmem:[%s10] sm:$0xff]
  %v42 = vld [vmem:[%s10 + $0x8] sm:$0xff]
  %v43 = vld [vmem:[%s10 + $0x10] sm:$0xff]
  %v44 = vld [vmem:[%s10 + $0x18] sm:$0xff]
  %v45 = vld [vmem:[%s10 + $0x20] sm:$0xff]
  %v46 = vld [vmem:[%s10 + $0x28] sm:$0xff]
  %v47 = vld [vmem:[%s10 + $0x30] sm:$0xff]
  %v48 = vld [vmem:[%s10 + $0x38] sm:$0xff]
  %v49 = vld [vmem:[%s10 + $0x40] sm:$0xff]
  %v50 = vld [vmem:[%s10 + $0x48] sm:$0xff]
  %v51 = vld [vmem:[%s10 + $0x50] sm:$0xff]
  %v52 = vld [vmem:[%s10 + $0x58] sm:$0xff]
  %v53 = vld [vmem:[%s10 + $0x60] sm:$0xff]
  %v54 = vld [vmem:[%s10 + $0x68] sm:$0xff]
  %v55 = vld [vmem:[%s10 + $0x70] sm:$0xff]
  %v56 = vld [vmem:[%s10 + $0x78] sm:$0xff]
  %v57 = vld [vmem:[%s11] sm:$0xff]
  %vm58 = vcmask 516096
  %59 = vst.msk [vmem:[#allocation2] sm:$0x1] %vm58, 0.0
  %60 = vst.msk [vmem:[#allocation2 + $0x18] sm:$0x1] %vm58, 0.0
  %61 = vst.msk [vmem:[#allocation2 + $0x11] sm:$0x1] %vm58, 0.0
  %62 = vst.msk [vmem:[#allocation2 + $0x29] sm:$0x1] %vm58, 0.0
  %v63 = vld [vmem:[%s0] sm:$0xff]
  %v64 = vld [vmem:[%s0 + $0x8] sm:$0xff]
  %v65 = vld [vmem:[%s0 + $0x10] sm:$0xff]
  %v66 = vld [vmem:[%s0 + $0x18] sm:$0xff]
  %vm67 = vcmask 523264
  %68 = vst.msk [vmem:[#allocation2 + $0x1] sm:$0xff] %vm67, %v63
  %69 = vst.msk [vmem:[#allocation2 + $0x9] sm:$0xff] %vm67, %v64
  %70 = vst.msk [vmem:[#allocation2 + $0x19] sm:$0xff] %vm67, %v65
  %71 = vst.msk [vmem:[#allocation2 + $0x21] sm:$0xff] %vm67, %v66
  %v72 = vld [vmem:[#allocation2 + $0x1] sm:$0xff]
  %v73 = vld [vmem:[#allocation2 + $0x9] sm:$0xff]
  %v74 = vld [vmem:[#allocation2 + $0x19] sm:$0xff]
  %v75 = vld [vmem:[#allocation2 + $0x21] sm:$0xff]
  %v76 = vld [vmem:[%s2] sm:$0xff]
  %v77 = vld [vmem:[%s2 + $0x8] sm:$0xff]
  %v78 = vld [vmem:[%s2 + $0x10] sm:$0xff]
  %v79 = vld [vmem:[%s2 + $0x18] sm:$0xff]
  %v80 = vld [vmem:[%s2 + $0x20] sm:$0xff]
  %v81 = vld [vmem:[%s2 + $0x28] sm:$0xff]
  %v82 = vld [vmem:[%s2 + $0x30] sm:$0xff]
  %v83 = vld [vmem:[%s2 + $0x38] sm:$0xff]
  %v84 = vld [vmem:[%s2 + $0x40] sm:$0xff]
  %v85 = vld [vmem:[%s2 + $0x48] sm:$0xff]
  %v86 = vld [vmem:[%s2 + $0x50] sm:$0xff]
  %v87 = vld [vmem:[%s2 + $0x58] sm:$0xff]
  %v88 = vld [vmem:[%s2 + $0x60] sm:$0xff]
  %v89 = vld [vmem:[%s2 + $0x68] sm:$0xff]
  %v90 = vld [vmem:[%s2 + $0x70] sm:$0xff]
  %v91 = vld [vmem:[%s2 + $0x78] sm:$0xff]
  %v93 = vsel %vm67, %v72, 0
  %v96 = vsel %vm67, %v73, 0
  %v99 = vsel %vm67, %v74, 0
  %v102 = vsel %vm67, %v75, 0
  %104 = vmatprep.subr.mxu0 %v77
  %105 = vmatpush1.msra.mxu0 %v76
  %106 = vmatprep.subr.mxu0 %v79
  %107 = vmatpush1.msra.mxu0 %v78
  %108 = vmatprep.subr.mxu0 %v81
  %109 = vmatpush1.msra.mxu0 %v80
  %110 = vmatprep.subr.mxu0 %v83
  %111 = vmatpush1.msra.mxu0 %v82
  %112 = vmatprep.subr.mxu0 %v85
  %113 = vmatpush1.msra.mxu0 %v84
  %114 = vmatprep.subr.mxu0 %v87
  %115 = vmatpush1.msra.mxu0 %v86
  %116 = vmatprep.subr.mxu0 %v89
  %117 = vmatpush1.msra.mxu0 %v88
  %118 = vmatprep.subr.mxu0 %v91
  %119 = vmatpush1.msra.mxu0 %v90
  %120 = vmatprep.subr.mxu0 0.0
  %121 = vmatpush1.msra.mxu0 0.0
  %122 = vmatprep.subr.mxu0 0.0
  %123 = vmatpush1.msra.mxu0 0.0
  %124 = vmatprep.subr.mxu0 0.0
  %125 = vmatpush1.msra.mxu0 0.0
  %126 = vmatprep.subr.mxu0 0.0
  %127 = vmatpush1.msra.mxu0 0.0
  %128 = vmatprep.subr.mxu0 0.0
  %129 = vmatpush1.msra.mxu0 0.0
  %130 = vmatprep.subr.mxu0 0.0
  %131 = vmatpush1.msra.mxu0 0.0
  %132 = vmatprep.subr.mxu0 0.0
  %133 = vmatpush1.msra.mxu0 0.0
  %134 = vmatprep.subr.mxu0 0.0
  %135 = vmatpush1.msra.mxu0 0.0
  %136 = vmatprep.subr.mxu0 0.0
  %137 = vmatpush1.msra.mxu0 0.0
  %138 = vmatprep.subr.mxu0 0.0
  %139 = vmatpush1.msra.mxu0 0.0
  %140 = vmatprep.subr.mxu0 0.0
  %141 = vmatpush1.msra.mxu0 0.0
  %142 = vmatprep.subr.mxu0 0.0
  %143 = vmatpush1.msra.mxu0 0.0
  %144 = vmatprep.subr.mxu0 0.0
  %145 = vmatpush1.msra.mxu0 0.0
  %146 = vmatprep.subr.mxu0 0.0
  %147 = vmatpush1.msra.mxu0 0.0
  %148 = vmatprep.subr.mxu0 0.0
  %149 = vmatpush1.msra.mxu0 0.0
  %150 = vmatprep.subr.mxu0 0.0
  %151 = vmatpush1.msra.mxu0 0.0
  %152 = vmatprep.subr.mxu0 0.0
  %153 = vmatpush1.msra.mxu0 0.0
  %154 = vmatprep.subr.mxu0 0.0
  %155 = vmatpush1.msra.mxu0 0.0
  %156 = vmatprep.subr.mxu0 0.0
  %157 = vmatpush1.msra.mxu0 0.0
  %158 = vmatprep.subr.mxu0 0.0
  %159 = vmatpush1.msra.mxu0 0.0
  %160 = vmatprep.subr.mxu0 0.0
  %161 = vmatpush1.msra.mxu0 0.0
  %162 = vmatprep.subr.mxu0 0.0
  %163 = vmatpush1.msra.mxu0 0.0
  %164 = vmatprep.subr.mxu0 0.0
  %165 = vmatpush1.msra.mxu0 0.0
  %166 = vmatprep.subr.mxu0 0.0
  %167 = vmatpush1.msra.mxu0 0.0
  %168 = vmatprep.mubr.f32.mxu0 0.0
  %169 = vmatmul.mubr.f32.gmra.mrb[0].mxu0 %v93
  %v170 = vpop.f32.mrb[0].mxu0
  %v171 = vadd.f32 0.0, %v170
  %v172 = vpop.f32.mrb[0].mxu0
  %v173 = vadd.f32 0.0, %v172
  %174 = vmatprep.mubr.f32.mxu0 0.0
  %175 = vmatmul.mubr.f32.gmra.mrb[0].mxu0 %v96
  %v176 = vpop.f32.mrb[0].mxu0
  %v177 = vadd.f32 0.0, %v176
  %v178 = vpop.f32.mrb[0].mxu0
  %v179 = vadd.f32 0.0, %v178
  %180 = vmatprep.mubr.f32.mxu0 0.0
  %181 = vmatmul.mubr.f32.gmra.mrb[0].mxu0 %v99
  %v182 = vpop.f32.mrb[0].mxu0
  %v183 = vadd.f32 0.0, %v182
  %v184 = vpop.f32.mrb[0].mxu0
  %v185 = vadd.f32 0.0, %v184
  %186 = vmatprep.mubr.f32.mxu0 0.0
  %187 = vmatmul.mubr.f32.gmra.mrb[0].mxu0 %v102
  %v188 = vpop.f32.mrb[0].mxu0
  %v189 = vadd.f32 0.0, %v188
  %v190 = vpop.f32.mrb[0].mxu0
  %v191 = vadd.f32 0.0, %v190
  %192 = vdwg.mxu0
  %v193 = vld [vmem:[#allocation2] sm:$0xff]
  %v194 = vld [vmem:[#allocation2 + $0x8] sm:$0xff]
  %v195 = vld [vmem:[#allocation2 + $0x18] sm:$0xff]
  %v196 = vld [vmem:[#allocation2 + $0x20] sm:$0xff]
  %v197 = vld [vmem:[%s1] sm:$0xff]
  %v198 = vld [vmem:[%s1 + $0x8] sm:$0xff]
  %v199 = vld [vmem:[%s1 + $0x10] sm:$0xff]
  %v200 = vld [vmem:[%s1 + $0x18] sm:$0xff]
  %v201 = vld [vmem:[%s1 + $0x20] sm:$0xff]
  %v202 = vld [vmem:[%s1 + $0x28] sm:$0xff]
  %v203 = vld [vmem:[%s1 + $0x30] sm:$0xff]
  %v204 = vld [vmem:[%s1 + $0x38] sm:$0xff]
  %v206 = vsel %vm67, %v193, 0
  %v209 = vsel %vm67, %v194, 0
  %v212 = vsel %vm67, %v195, 0
  %v215 = vsel %vm67, %v196, 0
  %217 = vmatprep.subr.mxu0 0.0
  %218 = vmatpush1.msra.mxu0 %v197
  %219 = vmatprep.subr.mxu0 0.0
  %220 = vmatpush1.msra.mxu0 %v198
  %221 = vmatprep.subr.mxu0 0.0
  %222 = vmatpush1.msra.mxu0 %v199
  %223 = vmatprep.subr.mxu0 0.0
  %224 = vmatpush1.msra.mxu0 %v200
  %225 = vmatprep.subr.mxu0 0.0
  %226 = vmatpush1.msra.mxu0 %v201
  %227 = vmatprep.subr.mxu0 0.0
  %228 = vmatpush1.msra.mxu0 %v202
  %229 = vmatprep.subr.mxu0 0.0
  %230 = vmatpush1.msra.mxu0 %v203
  %231 = vmatprep.subr.mxu0 0.0
  %232 = vmatpush1.msra.mxu0 %v204
  %233 = vmatprep.subr.mxu0 0.0
  %234 = vmatpush1.msra.mxu0 0.0
  %235 = vmatprep.subr.mxu0 0.0
  %236 = vmatpush1.msra.mxu0 0.0
  %237 = vmatprep.subr.mxu0 0.0
  %238 = vmatpush1.msra.mxu0 0.0
  %239 = vmatprep.subr.mxu0 0.0
  %240 = vmatpush1.msra.mxu0 0.0
  %241 = vmatprep.subr.mxu0 0.0
  %242 = vmatpush1.msra.mxu0 0.0
  %243 = vmatprep.subr.mxu0 0.0
  %244 = vmatpush1.msra.mxu0 0.0
  %245 = vmatprep.subr.mxu0 0.0
  %246 = vmatpush1.msra.mxu0 0.0
  %247 = vmatprep.subr.mxu0 0.0
  %248 = vmatpush1.msra.mxu0 0.0
  %249 = vmatprep.subr.mxu0 0.0
  %250 = vmatpush1.msra.mxu0 0.0
  %251 = vmatprep.subr.mxu0 0.0
  %252 = vmatpush1.msra.mxu0 0.0
  %253 = vmatprep.subr.mxu0 0.0
  %254 = vmatpush1.msra.mxu0 0.0
  %255 = vmatprep.subr.mxu0 0.0
  %256 = vmatpush1.msra.mxu0 0.0
  %257 = vmatprep.subr.mxu0 0.0
  %258 = vmatpush1.msra.mxu0 0.0
  %259 = vmatprep.subr.mxu0 0.0
  %260 = vmatpush1.msra.mxu0 0.0
  %261 = vmatprep.subr.mxu0 0.0
  %262 = vmatpush1.msra.mxu0 0.0
  %263 = vmatprep.subr.mxu0 0.0
  %264 = vmatpush1.msra.mxu0 0.0
  %265 = vmatprep.subr.mxu0 0.0
  %266 = vmatpush1.msra.mxu0 0.0
  %267 = vmatprep.subr.mxu0 0.0
  %268 = vmatpush1.msra.mxu0 0.0
  %269 = vmatprep.subr.mxu0 0.0
  %270 = vmatpush1.msra.mxu0 0.0
  %271 = vmatprep.subr.mxu0 0.0
  %272 = vmatpush1.msra.mxu0 0.0
  %273 = vmatprep.subr.mxu0 0.0
  %274 = vmatpush1.msra.mxu0 0.0
  %275 = vmatprep.subr.mxu0 0.0
  %276 = vmatpush1.msra.mxu0 0.0
  %277 = vmatprep.subr.mxu0 0.0
  %278 = vmatpush1.msra.mxu0 0.0
  %279 = vmatprep.subr.mxu0 0.0
  %280 = vmatpush1.msra.mxu0 0.0
  %281 = vmatprep.mubr.f32.mxu0 0.0
  %282 = vmatmul.mubr.f32.gmra.mrb[0].mxu0 %v206
  %v283 = vpop.f32.mrb[0].mxu0
  %v284 = vadd.f32 0.0, %v283
  %v285 = vpop.f32.mrb[0].mxu0
  %286 = vmatprep.mubr.f32.mxu0 0.0
  %287 = vmatmul.mubr.f32.gmra.mrb[0].mxu0 %v209
  %v288 = vpop.f32.mrb[0].mxu0
  %v289 = vadd.f32 0.0, %v288
  %v290 = vpop.f32.mrb[0].mxu0
  %291 = vmatprep.mubr.f32.mxu0 0.0
  %292 = vmatmul.mubr.f32.gmra.mrb[0].mxu0 %v212
  %v293 = vpop.f32.mrb[0].mxu0
  %v294 = vadd.f32 0.0, %v293
  %v295 = vpop.f32.mrb[0].mxu0
  %296 = vmatprep.mubr.f32.mxu0 0.0
  %297 = vmatmul.mubr.f32.gmra.mrb[0].mxu0 %v215
  %v298 = vpop.f32.mrb[0].mxu0
  %v299 = vadd.f32 0.0, %v298
  %v300 = vpop.f32.mrb[0].mxu0
  %301 = vdwg.mxu0
  %v302 = vadd.f32 %v171, %v284
  %v303 = vadd.f32 %v177, %v289
  %v304 = vadd.f32 %v183, %v294
  %v305 = vadd.f32 %v189, %v299
  %v306 = vld [vmem:[#allocation2 + $0x2] sm:$0xff]
  %v307 = vld [vmem:[#allocation2 + $0xa] sm:$0xff]
  %v308 = vld [vmem:[#allocation2 + $0x1a] sm:$0xff]
  %v309 = vld [vmem:[#allocation2 + $0x22] sm:$0xff]
  %s310 = scalar_lea.vmem %s1, 64
  %v311 = vld [vmem:[%s310] sm:$0xff]
  %v312 = vld [vmem:[%s310 + $0x8] sm:$0xff]
  %v313 = vld [vmem:[%s310 + $0x10] sm:$0xff]
  %v314 = vld [vmem:[%s310 + $0x18] sm:$0xff]
  %v315 = vld [vmem:[%s310 + $0x20] sm:$0xff]
  %v316 = vld [vmem:[%s310 + $0x28] sm:$0xff]
  %v317 = vld [vmem:[%s310 + $0x30] sm:$0xff]
  %v318 = vld [vmem:[%s310 + $0x38] sm:$0xff]
  %v320 = vsel %vm67, %v306, 0
  %v323 = vsel %vm67, %v307, 0
  %v326 = vsel %vm67, %v308, 0
  %v329 = vsel %vm67, %v309, 0
  %331 = vmatprep.subr.mxu0 0.0
  %332 = vmatpush1.msra.mxu0 %v311
  %333 = vmatprep.subr.mxu0 0.0
  %334 = vmatpush1.msra.mxu0 %v312
  %335 = vmatprep.subr.mxu0 0.0
  %336 = vmatpush1.msra.mxu0 %v313
  %337 = vmatprep.subr.mxu0 0.0
  %338 = vmatpush1.msra.mxu0 %v314
  %339 = vmatprep.subr.mxu0 0.0
  %340 = vmatpush1.msra.mxu0 %v315
  %341 = vmatprep.subr.mxu0 0.0
  %342 = vmatpush1.msra.mxu0 %v316
  %343 = vmatprep.subr.mxu0 0.0
  %344 = vmatpush1.msra.mxu0 %v317
  %345 = vmatprep.subr.mxu0 0.0
  %346 = vmatpush1.msra.mxu0 %v318
  %347 = vmatprep.subr.mxu0 0.0
  %348 = vmatpush1.msra.mxu0 0.0
  %349 = vmatprep.subr.mxu0 0.0
  %350 = vmatpush1.msra.mxu0 0.0
  %351 = vmatprep.subr.mxu0 0.0
  %352 = vmatpush1.msra.mxu0 0.0
  %353 = vmatprep.subr.mxu0 0.0
  %354 = vmatpush1.msra.mxu0 0.0
  %355 = vmatprep.subr.mxu0 0.0
  %356 = vmatpush1.msra.mxu0 0.0
  %357 = vmatprep.subr.mxu0 0.0
  %358 = vmatpush1.msra.mxu0 0.0
  %359 = vmatprep.subr.mxu0 0.0
  %360 = vmatpush1.msra.mxu0 0.0
  %361 = vmatprep.subr.mxu0 0.0
  %362 = vmatpush1.msra.mxu0 0.0
  %363 = vmatprep.subr.mxu0 0.0
  %364 = vmatpush1.msra.mxu0 0.0
  %365 = vmatprep.subr.mxu0 0.0
  %366 = vmatpush1.msra.mxu0 0.0
  %367 = vmatprep.subr.mxu0 0.0
  %368 = vmatpush1.msra.mxu0 0.0
  %369 = vmatprep.subr.mxu0 0.0
  %370 = vmatpush1.msra.mxu0 0.0
  %371 = vmatprep.subr.mxu0 0.0
  %372 = vmatpush1.msra.mxu0 0.0
  %373 = vmatprep.subr.mxu0 0.0
  %374 = vmatpush1.msra.mxu0 0.0
  %375 = vmatprep.subr.mxu0 0.0
  %376 = vmatpush1.msra.mxu0 0.0
  %377 = vmatprep.subr.mxu0 0.0
  %378 = vmatpush1.msra.mxu0 0.0
  %379 = vmatprep.subr.mxu0 0.0
  %380 = vmatpush1.msra.mxu0 0.0
  %381 = vmatprep.subr.mxu0 0.0
  %382 = vmatpush1.msra.mxu0 0.0
  %383 = vmatprep.subr.mxu0 0.0
  %384 = vmatpush1.msra.mxu0 0.0
  %385 = vmatprep.subr.mxu0 0.0
  %386 = vmatpush1.msra.mxu0 0.0
  %387 = vmatprep.subr.mxu0 0.0
  %388 = vmatpush1.msra.mxu0 0.0
  %389 = vmatprep.subr.mxu0 0.0
  %390 = vmatpush1.msra.mxu0 0.0
  %391 = vmatprep.subr.mxu0 0.0
  %392 = vmatpush1.msra.mxu0 0.0
  %393 = vmatprep.subr.mxu0 0.0
  %394 = vmatpush1.msra.mxu0 0.0
  %395 = vmatprep.mubr.f32.mxu0 0.0
  %396 = vmatmul.mubr.f32.gmra.mrb[0].mxu0 %v320
  %v397 = vpop.f32.mrb[0].mxu0
  %v398 = vadd.f32 0.0, %v397
  %v399 = vpop.f32.mrb[0].mxu0
  %400 = vmatprep.mubr.f32.mxu0 0.0
  %401 = vmatmul.mubr.f32.gmra.mrb[0].mxu0 %v323
  %v402 = vpop.f32.mrb[0].mxu0
  %v403 = vadd.f32 0.0, %v402
  %v404 = vpop.f32.mrb[0].mxu0
  %405 = vmatprep.mubr.f32.mxu0 0.0
  %406 = vmatmul.mubr.f32.gmra.mrb[0].mxu0 %v326
  %v407 = vpop.f32.mrb[0].mxu0
  %v408 = vadd.f32 0.0, %v407
  %v409 = vpop.f32.mrb[0].mxu0
  %410 = vmatprep.mubr.f32.mxu0 0.0
  %411 = vmatmul.mubr.f32.gmra.mrb[0].mxu0 %v329
  %v412 = vpop.f32.mrb[0].mxu0
  %v413 = vadd.f32 0.0, %v412
  %v414 = vpop.f32.mrb[0].mxu0
  %415 = vdwg.mxu0
  %v416 = vadd.f32 %v302, %v398
  %v417 = vadd.f32 %v303, %v403
  %v418 = vadd.f32 %v304, %v408
  %v419 = vadd.f32 %v305, %v413
  %v420 = vld [vmem:[%s4] sm:$0x1]
  %v421 = vld [vmem:[%s8] sm:$0x1]
  %v422 = vld [vmem:[%s5] sm:$0x1]
  %v423 = vld [vmem:[%s9] sm:$0x1]
  %v424 = vadd.f32 %v416, %v417
  %v425 = vadd.f32 %v424, %v418
  %v426 = vadd.f32 %v425, %v419
  %v427 = vrot.slane %v426, 4
  %v428 = vadd.f32 %v426, %v427
  %v429 = vrot.slane %v428, 2
  %v430 = vadd.f32 %v428, %v429
  %v431 = vrot.slane %v430, 1
  %v432 = vadd.f32 %v430, %v431
  %v433 = vmul.f32 %v416, %v416
  %v434 = vmul.f32 %v417, %v417
  %v435 = vmul.f32 %v418, %v418
  %v436 = vmul.f32 %v419, %v419
  %v437 = vadd.f32 %v433, %v434
  %v438 = vadd.f32 %v437, %v435
  %v439 = vadd.f32 %v438, %v436
  %v440 = vrot.slane %v439, 4
  %v441 = vadd.f32 %v439, %v440
  %v442 = vrot.slane %v441, 2
  %v443 = vadd.f32 %v441, %v442
  %v444 = vrot.slane %v443, 1
  %v445 = vadd.f32 %v443, %v444
  %v446 = vadd.f32 %v173, %v179
  %v447 = vadd.f32 %v446, %v185
  %v448 = vadd.f32 %v447, %v191
  %v449 = vrot.slane %v448, 4
  %v450 = vadd.f32 %v448, %v449
  %v451 = vrot.slane %v450, 2
  %v452 = vadd.f32 %v450, %v451
  %v453 = vrot.slane %v452, 1
  %v454 = vadd.f32 %v452, %v453
  %v455 = vmul.f32 %v173, %v173
  %v456 = vmul.f32 %v179, %v179
  %v457 = vmul.f32 %v185, %v185
  %v458 = vmul.f32 %v191, %v191
  %v459 = vadd.f32 %v455, %v456
  %v460 = vadd.f32 %v459, %v457
  %v461 = vadd.f32 %v460, %v458
  %v462 = vrot.slane %v461, 4
  %v463 = vadd.f32 %v461, %v462
  %v464 = vrot.slane %v463, 2
  %v465 = vadd.f32 %v463, %v464
  %v466 = vrot.slane %v465, 1
  %v467 = vadd.f32 %v465, %v466
  %vm468 = vcmask 1040384
  %v469 = vsel %vm468, %v432, %v445
  %vm470 = vcmask 1041408
  %v471 = vsel %vm470, %v469, %v454
  %vm472 = vcmask 1042432
  %v473 = vsel %vm472, %v471, %v467
  %474 = vmatprep.subr.mxu0 0.0
  %475 = vmatpush1.msra.mxu0 %v41
  %476 = vmatprep.subr.mxu0 0.0
  %477 = vmatpush1.msra.mxu0 %v42
  %478 = vmatprep.subr.mxu0 0.0
  %479 = vmatpush1.msra.mxu0 %v43
  %480 = vmatprep.subr.mxu0 0.0
  %481 = vmatpush1.msra.mxu0 %v44
  %482 = vmatprep.subr.mxu0 0.0
  %483 = vmatpush1.msra.mxu0 %v45
  %484 = vmatprep.subr.mxu0 0.0
  %485 = vmatpush1.msra.mxu0 %v46
  %486 = vmatprep.subr.mxu0 0.0
  %487 = vmatpush1.msra.mxu0 %v47
  %488 = vmatprep.subr.mxu0 0.0
  %489 = vmatpush1.msra.mxu0 %v48
  %490 = vmatprep.subr.mxu0 0.0
  %491 = vmatpush1.msra.mxu0 %v49
  %492 = vmatprep.subr.mxu0 0.0
  %493 = vmatpush1.msra.mxu0 %v50
  %494 = vmatprep.subr.mxu0 0.0
  %495 = vmatpush1.msra.mxu0 %v51
  %496 = vmatprep.subr.mxu0 0.0
  %497 = vmatpush1.msra.mxu0 %v52
  %498 = vmatprep.subr.mxu0 0.0
  %499 = vmatpush1.msra.mxu0 %v53
  %500 = vmatprep.subr.mxu0 0.0
  %501 = vmatpush1.msra.mxu0 %v54
  %502 = vmatprep.subr.mxu0 0.0
  %503 = vmatpush1.msra.mxu0 %v55
  %504 = vmatprep.subr.mxu0 0.0
  %505 = vmatpush1.msra.mxu0 %v56
  %506 = vmatprep.subr.mxu0 0.0
  %507 = vmatpush1.msra.mxu0 0.0
  %508 = vmatprep.subr.mxu0 0.0
  %509 = vmatpush1.msra.mxu0 0.0
  %510 = vmatprep.subr.mxu0 0.0
  %511 = vmatpush1.msra.mxu0 0.0
  %512 = vmatprep.subr.mxu0 0.0
  %513 = vmatpush1.msra.mxu0 0.0
  %514 = vmatprep.subr.mxu0 0.0
  %515 = vmatpush1.msra.mxu0 0.0
  %516 = vmatprep.subr.mxu0 0.0
  %517 = vmatpush1.msra.mxu0 0.0
  %518 = vmatprep.subr.mxu0 0.0
  %519 = vmatpush1.msra.mxu0 0.0
  %520 = vmatprep.subr.mxu0 0.0
  %521 = vmatpush1.msra.mxu0 0.0
  %522 = vmatprep.subr.mxu0 0.0
  %523 = vmatpush1.msra.mxu0 0.0
  %524 = vmatprep.subr.mxu0 0.0
  %525 = vmatpush1.msra.mxu0 0.0
  %526 = vmatprep.subr.mxu0 0.0
  %527 = vmatpush1.msra.mxu0 0.0
  %528 = vmatprep.subr.mxu0 0.0
  %529 = vmatpush1.msra.mxu0 0.0
  %530 = vmatprep.subr.mxu0 0.0
  %531 = vmatpush1.msra.mxu0 0.0
  %532 = vmatprep.subr.mxu0 0.0
  %533 = vmatpush1.msra.mxu0 0.0
  %534 = vmatprep.subr.mxu0 0.0
  %535 = vmatpush1.msra.mxu0 0.0
  %536 = vmatprep.subr.mxu0 0.0
  %537 = vmatpush1.msra.mxu0 0.0
  %538 = vmatprep.mubr.f32.mxu0 0.0
  %539 = vmatmul.mubr.f32.gmra.mrb[0].mxu0 %v473
  %v540 = vpop.f32.mrb[0].mxu0
  %v541 = vadd.f32 0.0, %v540
  %v542 = vpop.f32.mrb[0].mxu0
  %543 = vdwg.mxu0
  %v544 = vmul.f32 %v541, 0.001953125
  %v545 = vmul.f32 %v544, %v544
  %v547 = vrot.slane %v545, 7
  %v549 = vsub.f32 %v544, %v547
  %v550 = vadd.f32 %v549, 1e-05
  %v551 = vrsqrt.pop %v550
  %v554 = vunpack.c.l.s4 1966171168
  %v555 = vunpack.c.0.s8 %v554
  %v556 = vlaneseq
  %v557 = vshrl.u32 %v556, 7
  %v558 = vsub.s32 %v555, %v557
  %v559 = vrot.slane %v551, %v558
  %v560 = vcombine.high %v559, %v559
  %v562 = vunpack.c.l.s4 1966171168
  %v563 = vunpack.c.0.s8 %v562
  %v564 = vlaneseq
  %v565 = vshrl.u32 %v564, 7
  %v566 = vsub.s32 %v563, %v565
  %v567 = vrot.slane %v560, %v566
  %v569 = vmul.f32 %v420, %v567
  %v570 = vmul.f32 %v544, %v569
  %v571 = vsub.f32 %v422, %v570
  %v572 = vcombine.high %v567, %v567
  %v574 = vmul.f32 %v421, %v572
  %v576 = vlaneseq
  %v577 = vshrl.u32 %v576, 7
  %v578 = vsub.s32 0, %v577
  %v579 = vrot.slane %v574, %v578
  %v581 = vmul.f32 %v544, %v579
  %v584 = vunpack.c.l.s4 1966171168
  %v585 = vunpack.c.0.s8 %v584
  %v586 = vlaneseq
  %v587 = vshrl.u32 %v586, 7
  %v588 = vsub.s32 %v585, %v587
  %v589 = vrot.slane %v581, %v588
  %v591 = vunpack.c.l.s4 1966171168
  %v592 = vunpack.c.0.s8 %v591
  %v593 = vlaneseq
  %v594 = vshrl.u32 %v593, 7
  %v595 = vsub.s32 %v592, %v594
  %v596 = vrot.slane %v589, %v595
  %v597 = vcombine.high %v596, %v596
  %v599 = vsub.f32 %v423, %v597
  %v601 = vlaneseq
  %v602 = vshrl.u32 %v601, 7
  %v603 = vsub.s32 0, %v602
  %v604 = vrot.slane %v571, %v603
  %v607 = vlaneseq
  %v608 = vshrl.u32 %v607, 7
  %v609 = vsub.s32 0, %v608
  %v610 = vrot.slane %v599, %v609
  %v612 = vsel %vm468, %v569, %v604
  %v613 = vsel %vm470, %v612, %v579
  %v614 = vsel %vm472, %v613, %v610
  %vm615 = vcmask 64512
  %v617 = vsel %vm615, %v614, 0
  %619 = vmatprep.subr.mxu0 0.0
  %620 = vmatpush1.msra.mxu0 %v57
  %621 = vmatprep.subr.mxu0 0.0
  %622 = vmatpush1.msra.mxu0 0.0
  %623 = vmatprep.subr.mxu0 0.0
  %624 = vmatpush1.msra.mxu0 0.0
  %625 = vmatprep.subr.mxu0 0.0
  %626 = vmatpush1.msra.mxu0 0.0
  %627 = vmatprep.subr.mxu0 0.0
  %628 = vmatpush1.msra.mxu0 0.0
  %629 = vmatprep.subr.mxu0 0.0
  %630 = vmatpush1.msra.mxu0 0.0
  %631 = vmatprep.subr.mxu0 0.0
  %632 = vmatpush1.msra.mxu0 0.0
  %633 = vmatprep.subr.mxu0 0.0
  %634 = vmatpush1.msra.mxu0 0.0
  %635 = vmatprep.subr.mxu0 0.0
  %636 = vmatpush1.msra.mxu0 0.0
  %637 = vmatprep.subr.mxu0 0.0
  %638 = vmatpush1.msra.mxu0 0.0
  %639 = vmatprep.subr.mxu0 0.0
  %640 = vmatpush1.msra.mxu0 0.0
  %641 = vmatprep.subr.mxu0 0.0
  %642 = vmatpush1.msra.mxu0 0.0
  %643 = vmatprep.subr.mxu0 0.0
  %644 = vmatpush1.msra.mxu0 0.0
  %645 = vmatprep.subr.mxu0 0.0
  %646 = vmatpush1.msra.mxu0 0.0
  %647 = vmatprep.subr.mxu0 0.0
  %648 = vmatpush1.msra.mxu0 0.0
  %649 = vmatprep.subr.mxu0 0.0
  %650 = vmatpush1.msra.mxu0 0.0
  %651 = vmatprep.subr.mxu0 0.0
  %652 = vmatpush1.msra.mxu0 0.0
  %653 = vmatprep.subr.mxu0 0.0
  %654 = vmatpush1.msra.mxu0 0.0
  %655 = vmatprep.subr.mxu0 0.0
  %656 = vmatpush1.msra.mxu0 0.0
  %657 = vmatprep.subr.mxu0 0.0
  %658 = vmatpush1.msra.mxu0 0.0
  %659 = vmatprep.subr.mxu0 0.0
  %660 = vmatpush1.msra.mxu0 0.0
  %661 = vmatprep.subr.mxu0 0.0
  %662 = vmatpush1.msra.mxu0 0.0
  %663 = vmatprep.subr.mxu0 0.0
  %664 = vmatpush1.msra.mxu0 0.0
  %665 = vmatprep.subr.mxu0 0.0
  %666 = vmatpush1.msra.mxu0 0.0
  %667 = vmatprep.subr.mxu0 0.0
  %668 = vmatpush1.msra.mxu0 0.0
  %669 = vmatprep.subr.mxu0 0.0
  %670 = vmatpush1.msra.mxu0 0.0
  %671 = vmatprep.subr.mxu0 0.0
  %672 = vmatpush1.msra.mxu0 0.0
  %673 = vmatprep.subr.mxu0 0.0
  %674 = vmatpush1.msra.mxu0 0.0
  %675 = vmatprep.subr.mxu0 0.0
  %676 = vmatpush1.msra.mxu0 0.0
  %677 = vmatprep.subr.mxu0 0.0
  %678 = vmatpush1.msra.mxu0 0.0
  %679 = vmatprep.subr.mxu0 0.0
  %680 = vmatpush1.msra.mxu0 0.0
  %681 = vmatprep.subr.mxu0 0.0
  %682 = vmatpush1.msra.mxu0 0.0
  %683 = vmatprep.mubr.f32.mxu0 0.0
  %684 = vmatmul.mubr.f32.gmra.mrb[0].mxu0 %v617
  %v685 = vpop.f32.mrb[0].mxu0
  %v686 = vadd.f32 0.0, %v685
  %v687 = vpop.f32.mrb[0].mxu0
  %688 = vdwg.mxu0
  %v689 = vlaneseq
  %v690 = vshrl.u32 %v689, 7
  %v691 = vsub.s32 0, %v690
  %v692 = vrot.slane %v686, %v691
  %v693 = vmul.f32 %v416, %v692
  %v694 = vmul.f32 %v417, %v692
  %v695 = vmul.f32 %v418, %v692
  %v696 = vmul.f32 %v419, %v692
  %v697 = vlaneseq
  %v698 = vshrl.u32 %v697, 7
  %v699 = vsub.s32 1, %v698
  %v700 = vrot.slane %v686, %v699
  %v701 = vadd.f32 %v693, %v700
  %v702 = vadd.f32 %v694, %v700
  %v703 = vadd.f32 %v695, %v700
  %v704 = vadd.f32 %v696, %v700
  %v705 = vlaneseq
  %v706 = vshrl.u32 %v705, 7
  %v707 = vsub.s32 2, %v706
  %v708 = vrot.slane %v686, %v707
  %v709 = vmul.f32 %v173, %v708
  %v710 = vmul.f32 %v179, %v708
  %v711 = vmul.f32 %v185, %v708
  %v712 = vmul.f32 %v191, %v708
  %v713 = vlaneseq
  %v714 = vshrl.u32 %v713, 7
  %v715 = vsub.s32 3, %v714
  %v716 = vrot.slane %v686, %v715
  %v717 = vadd.f32 %v709, %v716
  %v718 = vadd.f32 %v710, %v716
  %v719 = vadd.f32 %v711, %v716
  %v720 = vadd.f32 %v712, %v716
  %721 = vst [vmem:[#allocation4] sm:$0xff] %v717
  %722 = vst [vmem:[#allocation4 + $0x8] sm:$0xff] %v718
  %723 = vst [vmem:[#allocation4 + $0x10] sm:$0xff] %v719
  %724 = vst [vmem:[#allocation4 + $0x18] sm:$0xff] %v720
  %v725 = vmax.f32 %v701, 0.0
  %v726 = vmax.f32 %v702, 0.0
  %v727 = vmax.f32 %v703, 0.0
  %v728 = vmax.f32 %v704, 0.0
  %729 = vst [vmem:[#allocation3] sm:$0x1] 0.0
  %730 = vst [vmem:[#allocation3 + $0x18] sm:$0x1] 0.0
  %731 = vst [vmem:[#allocation3 + $0x11] sm:$0x1] 0.0
  %732 = vst [vmem:[#allocation3 + $0x29] sm:$0x1] 0.0
  %733 = vst [vmem:[#allocation3 + $0x1] sm:$0xff] %v725
  %734 = vst [vmem:[#allocation3 + $0x9] sm:$0xff] %v726
  %735 = vst [vmem:[#allocation3 + $0x19] sm:$0xff] %v727
  %736 = vst [vmem:[#allocation3 + $0x21] sm:$0xff] %v728
  %v737 = vld [vmem:[#allocation3] sm:$0xff]
  %v738 = vld [vmem:[#allocation3 + $0x8] sm:$0xff]
  %v739 = vld [vmem:[#allocation3 + $0x18] sm:$0xff]
  %v740 = vld [vmem:[#allocation3 + $0x20] sm:$0xff]
  %v741 = vld [vmem:[%s3] sm:$0xff]
  %v742 = vld [vmem:[%s3 + $0x8] sm:$0xff]
  %v743 = vld [vmem:[%s3 + $0x10] sm:$0xff]
  %v744 = vld [vmem:[%s3 + $0x18] sm:$0xff]
  %v745 = vld [vmem:[%s3 + $0x20] sm:$0xff]
  %v746 = vld [vmem:[%s3 + $0x28] sm:$0xff]
  %v747 = vld [vmem:[%s3 + $0x30] sm:$0xff]
  %v748 = vld [vmem:[%s3 + $0x38] sm:$0xff]
  %v749 = vld [vmem:[%s3 + $0x40] sm:$0xff]
  %v750 = vld [vmem:[%s3 + $0x48] sm:$0xff]
  %v751 = vld [vmem:[%s3 + $0x50] sm:$0xff]
  %v752 = vld [vmem:[%s3 + $0x58] sm:$0xff]
  %v753 = vld [vmem:[%s3 + $0x60] sm:$0xff]
  %v754 = vld [vmem:[%s3 + $0x68] sm:$0xff]
  %v755 = vld [vmem:[%s3 + $0x70] sm:$0xff]
  %v756 = vld [vmem:[%s3 + $0x78] sm:$0xff]
  %v757 = vld [vmem:[#allocation3 + $0x1] sm:$0xff]
  %v758 = vld [vmem:[#allocation3 + $0x9] sm:$0xff]
  %v759 = vld [vmem:[#allocation3 + $0x19] sm:$0xff]
  %v760 = vld [vmem:[#allocation3 + $0x21] sm:$0xff]
  %s761 = scalar_lea.vmem %s3, 128
  %v762 = vld [vmem:[%s761] sm:$0xff]
  %v763 = vld [vmem:[%s761 + $0x8] sm:$0xff]
  %v764 = vld [vmem:[%s761 + $0x10] sm:$0xff]
  %v765 = vld [vmem:[%s761 + $0x18] sm:$0xff]
  %v766 = vld [vmem:[%s761 + $0x20] sm:$0xff]
  %v767 = vld [vmem:[%s761 + $0x28] sm:$0xff]
  %v768 = vld [vmem:[%s761 + $0x30] sm:$0xff]
  %v769 = vld [vmem:[%s761 + $0x38] sm:$0xff]
  %v770 = vld [vmem:[%s761 + $0x40] sm:$0xff]
  %v771 = vld [vmem:[%s761 + $0x48] sm:$0xff]
  %v772 = vld [vmem:[%s761 + $0x50] sm:$0xff]
  %v773 = vld [vmem:[%s761 + $0x58] sm:$0xff]
  %v774 = vld [vmem:[%s761 + $0x60] sm:$0xff]
  %v775 = vld [vmem:[%s761 + $0x68] sm:$0xff]
  %v776 = vld [vmem:[%s761 + $0x70] sm:$0xff]
  %v777 = vld [vmem:[%s761 + $0x78] sm:$0xff]
  %778 = vmatprep.subr.mxu0 0.0
  %779 = vmatpush1.msra.mxu0 %v762
  %780 = vmatprep.subr.mxu0 0.0
  %781 = vmatpush1.msra.mxu0 %v763
  %782 = vmatprep.subr.mxu0 0.0
  %783 = vmatpush1.msra.mxu0 %v764
  %784 = vmatprep.subr.mxu0 0.0
  %785 = vmatpush1.msra.mxu0 %v765
  %786 = vmatprep.subr.mxu0 0.0
  %787 = vmatpush1.msra.mxu0 %v766
  %788 = vmatprep.subr.mxu0 0.0
  %789 = vmatpush1.msra.mxu0 %v767
  %790 = vmatprep.subr.mxu0 0.0
  %791 = vmatpush1.msra.mxu0 %v768
  %792 = vmatprep.subr.mxu0 0.0
  %793 = vmatpush1.msra.mxu0 %v769
  %794 = vmatprep.subr.mxu0 0.0
  %795 = vmatpush1.msra.mxu0 %v770
  %796 = vmatprep.subr.mxu0 0.0
  %797 = vmatpush1.msra.mxu0 %v771
  %798 = vmatprep.subr.mxu0 0.0
  %799 = vmatpush1.msra.mxu0 %v772
  %800 = vmatprep.subr.mxu0 0.0
  %801 = vmatpush1.msra.mxu0 %v773
  %802 = vmatprep.subr.mxu0 0.0
  %803 = vmatpush1.msra.mxu0 %v774
  %804 = vmatprep.subr.mxu0 0.0
  %805 = vmatpush1.msra.mxu0 %v775
  %806 = vmatprep.subr.mxu0 0.0
  %807 = vmatpush1.msra.mxu0 %v776
  %808 = vmatprep.subr.mxu0 0.0
  %809 = vmatpush1.msra.mxu0 %v777
  %810 = vmatprep.subr.mxu0 0.0
  %811 = vmatpush1.msra.mxu0 0.0
  %812 = vmatprep.subr.mxu0 0.0
  %813 = vmatpush1.msra.mxu0 0.0
  %814 = vmatprep.subr.mxu0 0.0
  %815 = vmatpush1.msra.mxu0 0.0
  %816 = vmatprep.subr.mxu0 0.0
  %817 = vmatpush1.msra.mxu0 0.0
  %818 = vmatprep.subr.mxu0 0.0
  %819 = vmatpush1.msra.mxu0 0.0
  %820 = vmatprep.subr.mxu0 0.0
  %821 = vmatpush1.msra.mxu0 0.0
  %822 = vmatprep.subr.mxu0 0.0
  %823 = vmatpush1.msra.mxu0 0.0
  %824 = vmatprep.subr.mxu0 0.0
  %825 = vmatpush1.msra.mxu0 0.0
  %826 = vmatprep.subr.mxu0 0.0
  %827 = vmatpush1.msra.mxu0 0.0
  %828 = vmatprep.subr.mxu0 0.0
  %829 = vmatpush1.msra.mxu0 0.0
  %830 = vmatprep.subr.mxu0 0.0
  %831 = vmatpush1.msra.mxu0 0.0
  %832 = vmatprep.subr.mxu0 0.0
  %833 = vmatpush1.msra.mxu0 0.0
  %834 = vmatprep.subr.mxu0 0.0
  %835 = vmatpush1.msra.mxu0 0.0
  %836 = vmatprep.subr.mxu0 0.0
  %837 = vmatpush1.msra.mxu0 0.0
  %838 = vmatprep.subr.mxu0 0.0
  %839 = vmatpush1.msra.mxu0 0.0
  %840 = vmatprep.subr.mxu0 0.0
  %841 = vmatpush1.msra.mxu0 0.0
  %842 = vmatprep.mubr.f32.mxu0 0.0
  %843 = vmatmul.mubr.f32.gmra.mrb[0].mxu0 %v757
  %v844 = vpop.f32.mrb[0].mxu0
  %v845 = vadd.f32 0.0, %v844
  %v846 = vpop.f32.mrb[0].mxu0
  %847 = vmatprep.mubr.f32.mxu0 0.0
  %848 = vmatmul.mubr.f32.gmra.mrb[0].mxu0 %v758
  %v849 = vpop.f32.mrb[0].mxu0
  %v850 = vadd.f32 0.0, %v849
  %v851 = vpop.f32.mrb[0].mxu0
  %852 = vmatprep.mubr.f32.mxu0 0.0
  %853 = vmatmul.mubr.f32.gmra.mrb[0].mxu0 %v759
  %v854 = vpop.f32.mrb[0].mxu0
  %v855 = vadd.f32 0.0, %v854
  %v856 = vpop.f32.mrb[0].mxu0
  %857 = vmatprep.mubr.f32.mxu0 0.0
  %858 = vmatmul.mubr.f32.gmra.mrb[0].mxu0 %v760
  %v859 = vpop.f32.mrb[0].mxu0
  %v860 = vadd.f32 0.0, %v859
  %v861 = vpop.f32.mrb[0].mxu0
  %862 = vdwg.mxu0
  %863 = vmatprep.subr.mxu0 0.0
  %864 = vmatpush1.msra.mxu0 %v741
  %865 = vmatprep.subr.mxu0 0.0
  %866 = vmatpush1.msra.mxu0 %v742
  %867 = vmatprep.subr.mxu0 0.0
  %868 = vmatpush1.msra.mxu0 %v743
  %869 = vmatprep.subr.mxu0 0.0
  %870 = vmatpush1.msra.mxu0 %v744
  %871 = vmatprep.subr.mxu0 0.0
  %872 = vmatpush1.msra.mxu0 %v745
  %873 = vmatprep.subr.mxu0 0.0
  %874 = vmatpush1.msra.mxu0 %v746
  %875 = vmatprep.subr.mxu0 0.0
  %876 = vmatpush1.msra.mxu0 %v747
  %877 = vmatprep.subr.mxu0 0.0
  %878 = vmatpush1.msra.mxu0 %v748
  %879 = vmatprep.subr.mxu0 0.0
  %880 = vmatpush1.msra.mxu0 %v749
  %881 = vmatprep.subr.mxu0 0.0
  %882 = vmatpush1.msra.mxu0 %v750
  %883 = vmatprep.subr.mxu0 0.0
  %884 = vmatpush1.msra.mxu0 %v751
  %885 = vmatprep.subr.mxu0 0.0
  %886 = vmatpush1.msra.mxu0 %v752
  %887 = vmatprep.subr.mxu0 0.0
  %888 = vmatpush1.msra.mxu0 %v753
  %889 = vmatprep.subr.mxu0 0.0
  %890 = vmatpush1.msra.mxu0 %v754
  %891 = vmatprep.subr.mxu0 0.0
  %892 = vmatpush1.msra.mxu0 %v755
  %893 = vmatprep.subr.mxu0 0.0
  %894 = vmatpush1.msra.mxu0 %v756
  %895 = vmatprep.subr.mxu0 0.0
  %896 = vmatpush1.msra.mxu0 0.0
  %897 = vmatprep.subr.mxu0 0.0
  %898 = vmatpush1.msra.mxu0 0.0
  %899 = vmatprep.subr.mxu0 0.0
  %900 = vmatpush1.msra.mxu0 0.0
  %901 = vmatprep.subr.mxu0 0.0
  %902 = vmatpush1.msra.mxu0 0.0
  %903 = vmatprep.subr.mxu0 0.0
  %904 = vmatpush1.msra.mxu0 0.0
  %905 = vmatprep.subr.mxu0 0.0
  %906 = vmatpush1.msra.mxu0 0.0
  %907 = vmatprep.subr.mxu0 0.0
  %908 = vmatpush1.msra.mxu0 0.0
  %909 = vmatprep.subr.mxu0 0.0
  %910 = vmatpush1.msra.mxu0 0.0
  %911 = vmatprep.subr.mxu0 0.0
  %912 = vmatpush1.msra.mxu0 0.0
  %913 = vmatprep.subr.mxu0 0.0
  %914 = vmatpush1.msra.mxu0 0.0
  %915 = vmatprep.subr.mxu0 0.0
  %916 = vmatpush1.msra.mxu0 0.0
  %917 = vmatprep.subr.mxu0 0.0
  %918 = vmatpush1.msra.mxu0 0.0
  %919 = vmatprep.subr.mxu0 0.0
  %920 = vmatpush1.msra.mxu0 0.0
  %921 = vmatprep.subr.mxu0 0.0
  %922 = vmatpush1.msra.mxu0 0.0
  %923 = vmatprep.subr.mxu0 0.0
  %924 = vmatpush1.msra.mxu0 0.0
  %925 = vmatprep.subr.mxu0 0.0
  %926 = vmatpush1.msra.mxu0 0.0
  %927 = vmatprep.mubr.f32.mxu0 0.0
  %928 = vmatmul.mubr.f32.gmra.mrb[0].mxu0 %v737
  %v929 = vpop.f32.mrb[0].mxu0
  %v930 = vadd.f32 %v845, %v929
  %v931 = vpop.f32.mrb[0].mxu0
  %932 = vmatprep.mubr.f32.mxu0 0.0
  %933 = vmatmul.mubr.f32.gmra.mrb[0].mxu0 %v738
  %v934 = vpop.f32.mrb[0].mxu0
  %v935 = vadd.f32 %v850, %v934
  %v936 = vpop.f32.mrb[0].mxu0
  %937 = vmatprep.mubr.f32.mxu0 0.0
  %938 = vmatmul.mubr.f32.gmra.mrb[0].mxu0 %v739
  %v939 = vpop.f32.mrb[0].mxu0
  %v940 = vadd.f32 %v855, %v939
  %v941 = vpop.f32.mrb[0].mxu0
  %942 = vmatprep.mubr.f32.mxu0 0.0
  %943 = vmatmul.mubr.f32.gmra.mrb[0].mxu0 %v740
  %v944 = vpop.f32.mrb[0].mxu0
  %v945 = vadd.f32 %v860, %v944
  %v946 = vpop.f32.mrb[0].mxu0
  %947 = vdwg.mxu0
  %v948 = vld [vmem:[#allocation3 + $0x2] sm:$0xff]
  %v949 = vld [vmem:[#allocation3 + $0xa] sm:$0xff]
  %v950 = vld [vmem:[#allocation3 + $0x1a] sm:$0xff]
  %v951 = vld [vmem:[#allocation3 + $0x22] sm:$0xff]
  %s952 = scalar_lea.vmem %s3, 256
  %v953 = vld [vmem:[%s952] sm:$0xff]
  %v954 = vld [vmem:[%s952 + $0x8] sm:$0xff]
  %v955 = vld [vmem:[%s952 + $0x10] sm:$0xff]
  %v956 = vld [vmem:[%s952 + $0x18] sm:$0xff]
  %v957 = vld [vmem:[%s952 + $0x20] sm:$0xff]
  %v958 = vld [vmem:[%s952 + $0x28] sm:$0xff]
  %v959 = vld [vmem:[%s952 + $0x30] sm:$0xff]
  %v960 = vld [vmem:[%s952 + $0x38] sm:$0xff]
  %v961 = vld [vmem:[%s952 + $0x40] sm:$0xff]
  %v962 = vld [vmem:[%s952 + $0x48] sm:$0xff]
  %v963 = vld [vmem:[%s952 + $0x50] sm:$0xff]
  %v964 = vld [vmem:[%s952 + $0x58] sm:$0xff]
  %v965 = vld [vmem:[%s952 + $0x60] sm:$0xff]
  %v966 = vld [vmem:[%s952 + $0x68] sm:$0xff]
  %v967 = vld [vmem:[%s952 + $0x70] sm:$0xff]
  %v968 = vld [vmem:[%s952 + $0x78] sm:$0xff]
  %969 = vmatprep.subr.mxu0 0.0
  %970 = vmatpush1.msra.mxu0 %v953
  %971 = vmatprep.subr.mxu0 0.0
  %972 = vmatpush1.msra.mxu0 %v954
  %973 = vmatprep.subr.mxu0 0.0
  %974 = vmatpush1.msra.mxu0 %v955
  %975 = vmatprep.subr.mxu0 0.0
  %976 = vmatpush1.msra.mxu0 %v956
  %977 = vmatprep.subr.mxu0 0.0
  %978 = vmatpush1.msra.mxu0 %v957
  %979 = vmatprep.subr.mxu0 0.0
  %980 = vmatpush1.msra.mxu0 %v958
  %981 = vmatprep.subr.mxu0 0.0
  %982 = vmatpush1.msra.mxu0 %v959
  %983 = vmatprep.subr.mxu0 0.0
  %984 = vmatpush1.msra.mxu0 %v960
  %985 = vmatprep.subr.mxu0 0.0
  %986 = vmatpush1.msra.mxu0 %v961
  %987 = vmatprep.subr.mxu0 0.0
  %988 = vmatpush1.msra.mxu0 %v962
  %989 = vmatprep.subr.mxu0 0.0
  %990 = vmatpush1.msra.mxu0 %v963
  %991 = vmatprep.subr.mxu0 0.0
  %992 = vmatpush1.msra.mxu0 %v964
  %993 = vmatprep.subr.mxu0 0.0
  %994 = vmatpush1.msra.mxu0 %v965
  %995 = vmatprep.subr.mxu0 0.0
  %996 = vmatpush1.msra.mxu0 %v966
  %997 = vmatprep.subr.mxu0 0.0
  %998 = vmatpush1.msra.mxu0 %v967
  %999 = vmatprep.subr.mxu0 0.0
  %1000 = vmatpush1.msra.mxu0 %v968
  %1001 = vmatprep.subr.mxu0 0.0
  %1002 = vmatpush1.msra.mxu0 0.0
  %1003 = vmatprep.subr.mxu0 0.0
  %1004 = vmatpush1.msra.mxu0 0.0
  %1005 = vmatprep.subr.mxu0 0.0
  %1006 = vmatpush1.msra.mxu0 0.0
  %1007 = vmatprep.subr.mxu0 0.0
  %1008 = vmatpush1.msra.mxu0 0.0
  %1009 = vmatprep.subr.mxu0 0.0
  %1010 = vmatpush1.msra.mxu0 0.0
  %1011 = vmatprep.subr.mxu0 0.0
  %1012 = vmatpush1.msra.mxu0 0.0
  %1013 = vmatprep.subr.mxu0 0.0
  %1014 = vmatpush1.msra.mxu0 0.0
  %1015 = vmatprep.subr.mxu0 0.0
  %1016 = vmatpush1.msra.mxu0 0.0
  %1017 = vmatprep.subr.mxu0 0.0
  %1018 = vmatpush1.msra.mxu0 0.0
  %1019 = vmatprep.subr.mxu0 0.0
  %1020 = vmatpush1.msra.mxu0 0.0
  %1021 = vmatprep.subr.mxu0 0.0
  %1022 = vmatpush1.msra.mxu0 0.0
  %1023 = vmatprep.subr.mxu0 0.0
  %1024 = vmatpush1.msra.mxu0 0.0
  %1025 = vmatprep.subr.mxu0 0.0
  %1026 = vmatpush1.msra.mxu0 0.0
  %1027 = vmatprep.subr.mxu0 0.0
  %1028 = vmatpush1.msra.mxu0 0.0
  %1029 = vmatprep.subr.mxu0 0.0
  %1030 = vmatpush1.msra.mxu0 0.0
  %1031 = vmatprep.subr.mxu0 0.0
  %1032 = vmatpush1.msra.mxu0 0.0
  %1033 = vmatprep.mubr.f32.mxu0 0.0
  %1034 = vmatmul.mubr.f32.gmra.mrb[0].mxu0 %v948
  %v1035 = vpop.f32.mrb[0].mxu0
  %v1036 = vadd.f32 0.0, %v1035
  %v1037 = vpop.f32.mrb[0].mxu0
  %1038 = vmatprep.mubr.f32.mxu0 0.0
  %1039 = vmatmul.mubr.f32.gmra.mrb[0].mxu0 %v949
  %v1040 = vpop.f32.mrb[0].mxu0
  %v1041 = vadd.f32 0.0, %v1040
  %v1042 = vpop.f32.mrb[0].mxu0
  %1043 = vmatprep.mubr.f32.mxu0 0.0
  %1044 = vmatmul.mubr.f32.gmra.mrb[0].mxu0 %v950
  %v1045 = vpop.f32.mrb[0].mxu0
  %v1046 = vadd.f32 0.0, %v1045
  %v1047 = vpop.f32.mrb[0].mxu0
  %1048 = vmatprep.mubr.f32.mxu0 0.0
  %1049 = vmatmul.mubr.f32.gmra.mrb[0].mxu0 %v951
  %v1050 = vpop.f32.mrb[0].mxu0
  %v1051 = vadd.f32 0.0, %v1050
  %v1052 = vpop.f32.mrb[0].mxu0
  %1053 = vdwg.mxu0
  %v1054 = vadd.f32 %v930, %v1036
  %v1055 = vadd.f32 %v935, %v1041
  %v1056 = vadd.f32 %v940, %v1046
  %v1057 = vadd.f32 %v945, %v1051
  %v1058 = vld [vmem:[%s6] sm:$0x1]
  %v1059 = vld [vmem:[%s7] sm:$0x1]
  %v1060 = vadd.f32 %v1054, %v1055
  %v1061 = vadd.f32 %v1060, %v1056
  %v1062 = vadd.f32 %v1061, %v1057
  %v1063 = vrot.slane %v1062, 4
  %v1064 = vadd.f32 %v1062, %v1063
  %v1065 = vrot.slane %v1064, 2
  %v1066 = vadd.f32 %v1064, %v1065
  %v1067 = vrot.slane %v1066, 1
  %v1068 = vadd.f32 %v1066, %v1067
  %v1069 = vmul.f32 %v1054, %v1054
  %v1070 = vmul.f32 %v1055, %v1055
  %v1071 = vmul.f32 %v1056, %v1056
  %v1072 = vmul.f32 %v1057, %v1057
  %v1073 = vadd.f32 %v1069, %v1070
  %v1074 = vadd.f32 %v1073, %v1071
  %v1075 = vadd.f32 %v1074, %v1072
  %v1076 = vrot.slane %v1075, 4
  %v1077 = vadd.f32 %v1075, %v1076
  %v1078 = vrot.slane %v1077, 2
  %v1079 = vadd.f32 %v1077, %v1078
  %v1080 = vrot.slane %v1079, 1
  %v1081 = vadd.f32 %v1079, %v1080
  %v1082 = vsel %vm468, %v1068, %v1081
  %1083 = vmatprep.subr.mxu0 0.0
  %1084 = vmatpush1.msra.mxu0 %v41
  %1085 = vmatprep.subr.mxu0 0.0
  %1086 = vmatpush1.msra.mxu0 %v42
  %1087 = vmatprep.subr.mxu0 0.0
  %1088 = vmatpush1.msra.mxu0 %v43
  %1089 = vmatprep.subr.mxu0 0.0
  %1090 = vmatpush1.msra.mxu0 %v44
  %1091 = vmatprep.subr.mxu0 0.0
  %1092 = vmatpush1.msra.mxu0 %v45
  %1093 = vmatprep.subr.mxu0 0.0
  %1094 = vmatpush1.msra.mxu0 %v46
  %1095 = vmatprep.subr.mxu0 0.0
  %1096 = vmatpush1.msra.mxu0 %v47
  %1097 = vmatprep.subr.mxu0 0.0
  %1098 = vmatpush1.msra.mxu0 %v48
  %1099 = vmatprep.subr.mxu0 0.0
  %1100 = vmatpush1.msra.mxu0 %v49
  %1101 = vmatprep.subr.mxu0 0.0
  %1102 = vmatpush1.msra.mxu0 %v50
  %1103 = vmatprep.subr.mxu0 0.0
  %1104 = vmatpush1.msra.mxu0 %v51
  %1105 = vmatprep.subr.mxu0 0.0
  %1106 = vmatpush1.msra.mxu0 %v52
  %1107 = vmatprep.subr.mxu0 0.0
  %1108 = vmatpush1.msra.mxu0 %v53
  %1109 = vmatprep.subr.mxu0 0.0
  %1110 = vmatpush1.msra.mxu0 %v54
  %1111 = vmatprep.subr.mxu0 0.0
  %1112 = vmatpush1.msra.mxu0 %v55
  %1113 = vmatprep.subr.mxu0 0.0
  %1114 = vmatpush1.msra.mxu0 %v56
  %1115 = vmatprep.subr.mxu0 0.0
  %1116 = vmatpush1.msra.mxu0 0.0
  %1117 = vmatprep.subr.mxu0 0.0
  %1118 = vmatpush1.msra.mxu0 0.0
  %1119 = vmatprep.subr.mxu0 0.0
  %1120 = vmatpush1.msra.mxu0 0.0
  %1121 = vmatprep.subr.mxu0 0.0
  %1122 = vmatpush1.msra.mxu0 0.0
  %1123 = vmatprep.subr.mxu0 0.0
  %1124 = vmatpush1.msra.mxu0 0.0
  %1125 = vmatprep.subr.mxu0 0.0
  %1126 = vmatpush1.msra.mxu0 0.0
  %1127 = vmatprep.subr.mxu0 0.0
  %1128 = vmatpush1.msra.mxu0 0.0
  %1129 = vmatprep.subr.mxu0 0.0
  %1130 = vmatpush1.msra.mxu0 0.0
  %1131 = vmatprep.subr.mxu0 0.0
  %1132 = vmatpush1.msra.mxu0 0.0
  %1133 = vmatprep.subr.mxu0 0.0
  %1134 = vmatpush1.msra.mxu0 0.0
  %1135 = vmatprep.subr.mxu0 0.0
  %1136 = vmatpush1.msra.mxu0 0.0
  %1137 = vmatprep.subr.mxu0 0.0
  %1138 = vmatpush1.msra.mxu0 0.0
  %1139 = vmatprep.subr.mxu0 0.0
  %1140 = vmatpush1.msra.mxu0 0.0
  %1141 = vmatprep.subr.mxu0 0.0
  %1142 = vmatpush1.msra.mxu0 0.0
  %1143 = vmatprep.subr.mxu0 0.0
  %1144 = vmatpush1.msra.mxu0 0.0
  %1145 = vmatprep.subr.mxu0 0.0
  %1146 = vmatpush1.msra.mxu0 0.0
  %1147 = vmatprep.mubr.f32.mxu0 0.0
  %1148 = vmatmul.mubr.f32.gmra.mrb[0].mxu0 %v1082
  %v1149 = vpop.f32.mrb[0].mxu0
  %v1150 = vadd.f32 0.0, %v1149
  %v1151 = vpop.f32.mrb[0].mxu0
  %1152 = vdwg.mxu0
  %v1153 = vmul.f32 %v1150, 0.001953125
  %v1154 = vmul.f32 %v1153, %v1153
  %v1156 = vrot.slane %v1154, 7
  %v1158 = vsub.f32 %v1153, %v1156
  %v1159 = vadd.f32 %v1158, 1e-05
  %v1160 = vrsqrt.pop %v1159
  %v1163 = vunpack.c.l.s4 1966171168
  %v1164 = vunpack.c.0.s8 %v1163
  %v1165 = vlaneseq
  %v1166 = vshrl.u32 %v1165, 7
  %v1167 = vsub.s32 %v1164, %v1166
  %v1168 = vrot.slane %v1160, %v1167
  %v1169 = vcombine.high %v1168, %v1168
  %v1171 = vunpack.c.l.s4 1966171168
  %v1172 = vunpack.c.0.s8 %v1171
  %v1173 = vlaneseq
  %v1174 = vshrl.u32 %v1173, 7
  %v1175 = vsub.s32 %v1172, %v1174
  %v1176 = vrot.slane %v1169, %v1175
  %v1178 = vmul.f32 %v1058, %v1176
  %v1179 = vmul.f32 %v1153, %v1178
  %v1180 = vsub.f32 %v1059, %v1179
  %v1182 = vlaneseq
  %v1183 = vshrl.u32 %v1182, 7
  %v1184 = vsub.s32 0, %v1183
  %v1185 = vrot.slane %v1180, %v1184
  %v1187 = vsel %vm468, %v1178, %v1185
  %v1189 = vsel %vm615, %v1187, 0
  %1191 = vmatprep.subr.mxu0 0.0
  %1192 = vmatpush1.msra.mxu0 %v57
  %1193 = vmatprep.subr.mxu0 0.0
  %1194 = vmatpush1.msra.mxu0 0.0
  %1195 = vmatprep.subr.mxu0 0.0
  %1196 = vmatpush1.msra.mxu0 0.0
  %1197 = vmatprep.subr.mxu0 0.0
  %1198 = vmatpush1.msra.mxu0 0.0
  %1199 = vmatprep.subr.mxu0 0.0
  %1200 = vmatpush1.msra.mxu0 0.0
  %1201 = vmatprep.subr.mxu0 0.0
  %1202 = vmatpush1.msra.mxu0 0.0
  %1203 = vmatprep.subr.mxu0 0.0
  %1204 = vmatpush1.msra.mxu0 0.0
  %1205 = vmatprep.subr.mxu0 0.0
  %1206 = vmatpush1.msra.mxu0 0.0
  %1207 = vmatprep.subr.mxu0 0.0
  %1208 = vmatpush1.msra.mxu0 0.0
  %1209 = vmatprep.subr.mxu0 0.0
  %1210 = vmatpush1.msra.mxu0 0.0
  %1211 = vmatprep.subr.mxu0 0.0
  %1212 = vmatpush1.msra.mxu0 0.0
  %1213 = vmatprep.subr.mxu0 0.0
  %1214 = vmatpush1.msra.mxu0 0.0
  %1215 = vmatprep.subr.mxu0 0.0
  %1216 = vmatpush1.msra.mxu0 0.0
  %1217 = vmatprep.subr.mxu0 0.0
  %1218 = vmatpush1.msra.mxu0 0.0
  %1219 = vmatprep.subr.mxu0 0.0
  %1220 = vmatpush1.msra.mxu0 0.0
  %1221 = vmatprep.subr.mxu0 0.0
  %1222 = vmatpush1.msra.mxu0 0.0
  %1223 = vmatprep.subr.mxu0 0.0
  %1224 = vmatpush1.msra.mxu0 0.0
  %1225 = vmatprep.subr.mxu0 0.0
  %1226 = vmatpush1.msra.mxu0 0.0
  %1227 = vmatprep.subr.mxu0 0.0
  %1228 = vmatpush1.msra.mxu0 0.0
  %1229 = vmatprep.subr.mxu0 0.0
  %1230 = vmatpush1.msra.mxu0 0.0
  %1231 = vmatprep.subr.mxu0 0.0
  %1232 = vmatpush1.msra.mxu0 0.0
  %1233 = vmatprep.subr.mxu0 0.0
  %1234 = vmatpush1.msra.mxu0 0.0
  %1235 = vmatprep.subr.mxu0 0.0
  %1236 = vmatpush1.msra.mxu0 0.0
  %1237 = vmatprep.subr.mxu0 0.0
  %1238 = vmatpush1.msra.mxu0 0.0
  %1239 = vmatprep.subr.mxu0 0.0
  %1240 = vmatpush1.msra.mxu0 0.0
  %1241 = vmatprep.subr.mxu0 0.0
  %1242 = vmatpush1.msra.mxu0 0.0
  %1243 = vmatprep.subr.mxu0 0.0
  %1244 = vmatpush1.msra.mxu0 0.0
  %1245 = vmatprep.subr.mxu0 0.0
  %1246 = vmatpush1.msra.mxu0 0.0
  %1247 = vmatprep.subr.mxu0 0.0
  %1248 = vmatpush1.msra.mxu0 0.0
  %1249 = vmatprep.subr.mxu0 0.0
  %1250 = vmatpush1.msra.mxu0 0.0
  %1251 = vmatprep.subr.mxu0 0.0
  %1252 = vmatpush1.msra.mxu0 0.0
  %1253 = vmatprep.subr.mxu0 0.0
  %1254 = vmatpush1.msra.mxu0 0.0
  %1255 = vmatprep.mubr.f32.mxu0 0.0
  %1256 = vmatmul.mubr.f32.gmra.mrb[0].mxu0 %v1189
  %v1257 = vpop.f32.mrb[0].mxu0
  %v1258 = vadd.f32 0.0, %v1257
  %v1259 = vpop.f32.mrb[0].mxu0
  %1260 = vdwg.mxu0
  %v1261 = vlaneseq
  %v1262 = vshrl.u32 %v1261, 7
  %v1263 = vsub.s32 0, %v1262
  %v1264 = vrot.slane %v1258, %v1263
  %v1265 = vmul.f32 %v1054, %v1264
  %v1266 = vmul.f32 %v1055, %v1264
  %v1267 = vmul.f32 %v1056, %v1264
  %v1268 = vmul.f32 %v1057, %v1264
  %v1269 = vlaneseq
  %v1270 = vshrl.u32 %v1269, 7
  %v1271 = vsub.s32 1, %v1270
  %v1272 = vrot.slane %v1258, %v1271
  %v1273 = vadd.f32 %v1265, %v1272
  %v1274 = vadd.f32 %v1266, %v1272
  %v1275 = vadd.f32 %v1267, %v1272
  %v1276 = vadd.f32 %v1268, %v1272
  %v1277 = vld [vmem:[#allocation4] sm:$0xff]
  %v1278 = vld [vmem:[#allocation4 + $0x8] sm:$0xff]
  %v1279 = vld [vmem:[#allocation4 + $0x10] sm:$0xff]
  %v1280 = vld [vmem:[#allocation4 + $0x18] sm:$0xff]
  %v1281 = vadd.f32 %v1273, %v1277
  %v1282 = vadd.f32 %v1274, %v1278
  %v1283 = vadd.f32 %v1275, %v1279
  %v1284 = vadd.f32 %v1276, %v1280
  %v1285 = vmax.f32 %v1281, 0.0
  %v1286 = vmax.f32 %v1282, 0.0
  %v1287 = vmax.f32 %v1283, 0.0
  %v1288 = vmax.f32 %v1284, 0.0
  %1289 = vst [vmem:[%s12] sm:$0xff] %v1285
  %1290 = vst [vmem:[%s12 + $0x8] sm:$0xff] %v1286
  %1291 = vst [vmem:[%s12 + $0x10] sm:$0xff] %v1287
  %1292 = vst [vmem:[%s12 + $0x18] sm:$0xff] %v1288
  // Predicated region
  $region50: #{residual_block.1} parent=0 // pred_check
    _
  $region51: #{residual_block.1} parent=0 // pred_check_branch
    %1294 = sbr.rel (0) target = $region53
  $region52: #{residual_block.1} parent=0 // pred_region
    _
  $region53: #{residual_block.1} parent=0 // pred_fallthru
    _
  // Predicated region
  $region54: #{residual_block.1} parent=0 // pred_check
    _
  $region55: #{residual_block.1} parent=0 // pred_check_branch
    %1296 = sbr.rel (0) target = $region57
  $region56: #{residual_block.1} parent=0 // pred_region
    _
  $region57: #{residual_block.1} parent=0 // pred_fallthru
    _

</llo_original>
